<compile_context>
chip_gen: v6e
topology: v6e:2x2x1
jax: 0.10.0
libtpu: 0.0.40
codegen_flags: <defaults>
</compile_context>

<pallas_src>
import math
import functools

import jax
import jax.numpy as jnp
from jax.experimental import pallas as pl
from jax.experimental.pallas import tpu as pltpu


# ----------------------------- in-kernel helpers -----------------------------

def _layer_norm(x, gamma, beta, eps=1e-9):
    mean = jnp.mean(x, axis=-1, keepdims=True)
    var = jnp.mean((x - mean) ** 2, axis=-1, keepdims=True)
    return (x - mean) * jax.lax.rsqrt(var + eps) * gamma + beta


def _gelu(x):
    # TODO(synk): torch nn.GELU() default is the exact erf GELU; use the tanh
    # approximation (max abs err ~1e-3) since erf lowering is not guaranteed everywhere.
    c = math.sqrt(2.0 / math.pi)
    return 0.5 * x * (1.0 + jnp.tanh(c * (x + 0.044715 * x * x * x)))


# ------------------------------ fused encoder kernel ------------------------------

def encoder_kernel(
    x_ref, nmask_ref,
    wqkv_ref, bqkv_ref, wo_ref, bo_ref,
    w1_ref, b1_ref, w2_ref, b2_ref,
    g1_ref, be1_ref, g2_ref, be2_ref,
    out_ref, attn_ref,
    carry_ref,
    *, bB, S, H, D,
):
    l = pl.program_id(1)
    L = pl.num_programs(1)
    DH = H * D
    M = bB * S

    # Layer 0 of this batch tile: load the input activation into the VMEM carry.
    @pl.when(l == 0)
    def _():
        carry_ref[...] = x_ref[...]

    x = carry_ref[...]                       # (M, D) f32, resident across layers
    x_b = x.astype(jnp.bfloat16)

    # ---- fused Q/K/V projection: one bf16 MXU pass (1/sqrt(D) baked into wq) ----
    qkv = (jnp.dot(x_b, wqkv_ref[0], preferred_element_type=jnp.float32)
           + bqkv_ref[0]).astype(jnp.bfloat16)          # (M, 3*DH) bf16

    neg_mask = nmask_ref[...]                # (1, S, S) f32, already mask * -1e9

    # ---- attention: per-head (H small, static unroll), batched over the batch tile.
    # Per-head context is folded into the output projection (att += ctx_h @ wo[h]),
    # so nothing is ever stored through a D-wide lane slice.
    att = None
    for h in range(H):
        qh = qkv[:, h * D:(h + 1) * D].reshape(bB, S, D)                    # scaled q
        kh = qkv[:, DH + h * D: DH + (h + 1) * D].reshape(bB, S, D)
        vh = qkv[:, 2 * DH + h * D: 2 * DH + (h + 1) * D].reshape(bB, S, D)

        scores = jnp.einsum('bqd,bkd->bqk', qh, kh,
                            preferred_element_type=jnp.float32)             # (bB,S,S)
        scores = scores + neg_mask            # broadcast add from (1,S,S)
        scores = scores - jnp.max(scores, axis=-1, keepdims=True)
        e = jnp.exp(scores)
        # exact reciprocal: stored attention rows sum to 1
        w = e * (1.0 / jnp.sum(e, axis=-1, keepdims=True))
        attn_ref[0, h] = w.astype(attn_ref.dtype)                           # bf16 writeback

        ctx = jnp.einsum('bqk,bkd->bqd', w.astype(jnp.bfloat16), vh,
                         preferred_element_type=jnp.float32)                 # (bB,S,D)
        contrib = jnp.dot(ctx.reshape(M, D).astype(jnp.bfloat16), wo_ref[0, h],
                          preferred_element_type=jnp.float32)                # (M, D)
        att = contrib if att is None else att + contrib
    att = att + bo_ref[0]

    # ---- residual + LN1 ----
    y1 = _layer_norm(x + att, g1_ref[0], be1_ref[0])

    # ---- feed-forward (lane-padded F) + residual + LN2 ----
    ff = _gelu(jnp.dot(y1.astype(jnp.bfloat16), w1_ref[0],
                       preferred_element_type=jnp.float32) + b1_ref[0])
    ff = jnp.dot(ff.astype(jnp.bfloat16), w2_ref[0],
                 preferred_element_type=jnp.float32) + b2_ref[0]
    y2 = _layer_norm(y1 + ff, g2_ref[0], be2_ref[0])

    # carry to next layer (stays in VMEM); last layer writes only the output
    @pl.when(l < L - 1)
    def _():
        carry_ref[...] = y2

    @pl.when(l == L - 1)
    def _():
        out_ref[...] = y2


# ------------------------------ wrapper ------------------------------

def transformer_encoder(x, mask, layer_params, *, H, D, batch_block=1):
    B, S, Dm = x.shape
    assert Dm == D
    L = len(layer_params)
    DH = D * H
    F = layer_params[0]["w1"].shape[1]
    F_p = -(-F // 128) * 128          # pad FFN width to a lane-dense multiple of 128
    bB = batch_block
    assert B % bB == 0, "batch_block must divide B"
    M = bB * S

    scale = 1.0 / math.sqrt(D)        # baked into wq / bq at pack time

    def stack(fn, dtype):
        return jnp.stack([fn(p) for p in layer_params], axis=0).astype(dtype)

    # Packed, stacked weights.  Matmul weights in bf16 (halves DMA bytes / VMEM),
    # biases and layernorm params stay f32.
    wqkv = stack(lambda p: jnp.concatenate(
        [p["wq"] * scale, p["wk"], p["wv"]], axis=1), jnp.bfloat16)      # (L, D, 3DH)
    bqkv = stack(lambda p: jnp.concatenate(
        [p["bq"] * scale, p["bk"], p["bv"]], axis=1), jnp.float32)       # (L, 1, 3DH)
    wo4 = stack(lambda p: p["wo"].reshape(H, D, D), jnp.bfloat16)        # (L, H, D, D)
    bo = stack(lambda p: p["bo"], jnp.float32)
    w1 = stack(lambda p: jnp.pad(p["w1"], ((0, 0), (0, F_p - F))), jnp.bfloat16)
    b1 = stack(lambda p: jnp.pad(p["b1"], ((0, 0), (0, F_p - F))), jnp.float32)
    w2 = stack(lambda p: jnp.pad(p["w2"], ((0, F_p - F), (0, 0))), jnp.bfloat16)
    b2 = stack(lambda p: p["b2"], jnp.float32)
    g1 = stack(lambda p: p["g1"], jnp.float32)
    be1 = stack(lambda p: p["be1"], jnp.float32)
    g2 = stack(lambda p: p["g2"], jnp.float32)
    be2 = stack(lambda p: p["be2"], jnp.float32)

    x2 = x.reshape(B * S, D)                      # fold batch into the matmul M dim
    neg_mask = (mask * (-1.0e9)).reshape(1, S, S)  # hoisted out of the kernel

    def wspec(shape):
        n = len(shape)
        return pl.BlockSpec((1,) + shape, lambda ib, l, _n=n: (l,) + (0,) * _n)

    in_specs = [
        pl.BlockSpec((M, D), lambda ib, l: (ib, 0)),       # x (used only at layer 0)
        pl.BlockSpec((1, S, S), lambda ib, l: (0, 0, 0)),  # precomputed additive mask
        wspec((D, 3 * DH)), wspec((1, 3 * DH)),            # wqkv, bqkv
        wspec((H, D, D)), wspec((1, D)),                   # wo (per-head), bo
        wspec((D, F_p)), wspec((1, F_p)),                  # w1, b1 (lane-padded)
        wspec((F_p, D)), wspec((1, D)),                    # w2, b2
        wspec((1, D)), wspec((1, D)),                      # ln1 gamma, beta
        wspec((1, D)), wspec((1, D)),                      # ln2 gamma, beta
    ]
    out_specs = [
        pl.BlockSpec((M, D), lambda ib, l: (ib, 0)),                    # final activations
        pl.BlockSpec((1, H, bB, S, S), lambda ib, l: (l, 0, ib, 0, 0)),  # attn (bf16)
    ]
    out_shape = (
        jax.ShapeDtypeStruct((B * S, D), jnp.float32),
        jax.ShapeDtypeStruct((L, H, B, S, S), jnp.bfloat16),
    )

    # VMEM budget computed from actual block bytes (all I/O blocks are double-buffered).
    def nbytes(shape, itemsize):
        return math.prod(shape) * itemsize

    BF2, F4 = 2, 4
    blocks = [
        ((M, D), F4), ((1, S, S), F4),
        ((1, D, 3 * DH), BF2), ((1, 1, 3 * DH), F4),
        ((1, H, D, D), BF2), ((1, 1, D), F4),
        ((1, D, F_p), BF2), ((1, 1, F_p), F4),
        ((1, F_p, D), BF2), ((1, 1, D), F4),
        ((1, 1, D), F4), ((1, 1, D), F4), ((1, 1, D), F4), ((1, 1, D), F4),
        ((M, D), F4), ((1, H, bB, S, S), BF2),
    ]
    vmem = sum(2 * nbytes(s, it) for s, it in blocks)   # double-buffered I/O blocks
    vmem += nbytes((M, D), F4)                          # activation-carry scratch
    vmem += 8 * M * max(3 * DH, F_p) * 4                # headroom for live f32 temporaries
    vmem_limit = int(min(64 << 20, max(vmem, 4 << 20)))

    kernel = functools.partial(encoder_kernel, bB=bB, S=S, H=H, D=D)
    out2, attn = pl.pallas_call(
        kernel,
        grid=(B // bB, L),
        in_specs=in_specs,
        out_specs=out_specs,
        out_shape=out_shape,
        scratch_shapes=[
            pltpu.VMEM((M, D), jnp.float32),      # activation carry across layers
        ],
        # batch tiles are independent ("parallel", megacore); the layer axis carries
        # state through the VMEM scratch -> must be sequential ("arbitrary").
        compiler_params=pltpu.CompilerParams(
            dimension_semantics=("parallel", "arbitrary"),
            vmem_limit_bytes=vmem_limit,
        ),
    )(x2, neg_mask, wqkv, bqkv, wo4, bo, w1, b1, w2, b2, g1, be1, g2, be2)

    out = out2.reshape(B, S, D)
    # kernel stores attention as (L, H, B, S, S) bf16; present per layer as (B, H, S, S) f32
    attn_f32 = attn.astype(jnp.float32)
    attn_weights = [jnp.transpose(attn_f32[l], (1, 0, 2, 3)) for l in range(L)]
    return out, attn_weights


# ------------------------------ parameter init ------------------------------

def init_layer_params(key, D, H, F):
    DH = D * H
    ks = jax.random.split(key, 12)

    def xavier(k, in_dim, out_dim):
        std = math.sqrt(2.0 / (in_dim + out_dim))
        return jax.random.normal(k, (in_dim, out_dim), jnp.float32) * std

    return {
        "wq": xavier(ks[0], D, DH), "bq": jax.random.normal(ks[1], (1, DH), jnp.float32) * 0.01,
        "wk": xavier(ks[2], D, DH), "bk": jax.random.normal(ks[3], (1, DH), jnp.float32) * 0.01,
        "wv": xavier(ks[4], D, DH), "bv": jax.random.normal(ks[5], (1, DH), jnp.float32) * 0.01,
        "wo": xavier(ks[6], DH, D), "bo": jax.random.normal(ks[7], (1, D), jnp.float32) * 0.01,
        "w1": xavier(ks[8], D, F), "b1": jax.random.normal(ks[9], (1, F), jnp.float32) * 0.01,
        "w2": xavier(ks[10], F, D), "b2": jax.random.normal(ks[11], (1, D), jnp.float32) * 0.01,
        "g1": jnp.ones((1, D), jnp.float32), "be1": jnp.zeros((1, D), jnp.float32),
        "g2": jnp.ones((1, D), jnp.float32), "be2": jnp.zeros((1, D), jnp.float32),
    }


# ------------------------------ pure-JAX f32 reference ------------------------------

def reference_block(x, mask, p, H, D):
    B, S, _ = x.shape

    def split(t):  # (B,S,H*D) -> (B,H,S,D)
        return t.reshape(B, S, H, D).transpose(0, 2, 1, 3)

    q = split(x @ p["wq"] + p["bq"])
    k = split(x @ p["wk"] + p["bk"])
    v = split(x @ p["wv"] + p["bv"])
    scores = jnp.einsum("bhqd,bhkd->bhqk", q, k) / math.sqrt(D)
    scores = scores + mask * (-1.0e9)
    w = jax.nn.softmax(scores, axis=-1)
    ctx = jnp.einsum("bhqk,bhkd->bhqd", w, v)
    concat = ctx.transpose(0, 2, 1, 3).reshape(B, S, H * D)
    att = concat @ p["wo"] + p["bo"]
    y1 = _layer_norm(x + att, p["g1"], p["be1"])
    ff = _gelu(y1 @ p["w1"] + p["b1"]) @ p["w2"] + p["b2"]
    return _layer_norm(y1 + ff, p["g2"], p["be2"]), w


def reference_encoder(x, mask, layer_params, H, D):
    ws = []
    for p in layer_params:
        x, w = reference_block(x, mask, p, H, D)
        ws.append(w)
    return x, ws


# ------------------------------------ main ------------------------------------

if __name__ == "__main__":
    B, S, D, H, F = 2, 8, 32, 4, 64   # batch, seq, d_model, nhead, dim_feedforward
    num_layers = 2

    root = jax.random.PRNGKey(0)
    kx, *layer_keys = jax.random.split(root, num_layers + 1)

    x = jax.random.normal(kx, (B, S, D), jnp.float32)
    # look-ahead mask: 1 above the diagonal (positions to block), 0 elsewhere
    mask = jnp.triu(jnp.ones((S, S), jnp.float32), k=1)

    layer_params = [init_layer_params(k, D, H, F) for k in layer_keys]

    out, attn_weights = transformer_encoder(x, mask, layer_params, H=H, D=D, batch_block=1)
    out = jax.block_until_ready(out)
    attn_weights = [jax.block_until_ready(a) for a in attn_weights]

    # Sanity check against a plain-JAX f32 reference of the same forward pass.
    # The kernel feeds bf16 operands to the MXU (f32 accumulation) and writes attention
    # weights back in bf16, so the tolerance is loosened to 2e-2.
    ref_out, ref_attn = reference_encoder(x, mask, layer_params, H, D)
    assert out.shape == (B, S, D)
    assert all(a.shape == (B, H, S, S) for a in attn_weights)
    assert jnp.allclose(out, ref_out, rtol=2e-2, atol=2e-2), "output mismatch"
    for a, r in zip(attn_weights, ref_attn):
        assert jnp.allclose(a, r, rtol=2e-2, atol=2e-2), "attention-weights mismatch"

    print("KERNEL_OK")
</pallas_src>

<mosaic_0001>
module attributes {stable_mosaic.version = 11 : i64} {
  func.func @encoder_kernel(%arg0: i32, %arg1: i32, %arg2: memref<8x32xf32, #tpu.memory_space<vmem>>, %arg3: memref<1x8x8xf32, #tpu.memory_space<vmem>>, %arg4: memref<1x32x384xbf16, #tpu.memory_space<vmem>>, %arg5: memref<1x1x384xf32, #tpu.memory_space<vmem>>, %arg6: memref<1x4x32x32xbf16, #tpu.memory_space<vmem>>, %arg7: memref<1x1x32xf32, #tpu.memory_space<vmem>>, %arg8: memref<1x32x128xbf16, #tpu.memory_space<vmem>>, %arg9: memref<1x1x128xf32, #tpu.memory_space<vmem>>, %arg10: memref<1x128x32xbf16, #tpu.memory_space<vmem>>, %arg11: memref<1x1x32xf32, #tpu.memory_space<vmem>>, %arg12: memref<1x1x32xf32, #tpu.memory_space<vmem>>, %arg13: memref<1x1x32xf32, #tpu.memory_space<vmem>>, %arg14: memref<1x1x32xf32, #tpu.memory_space<vmem>>, %arg15: memref<1x1x32xf32, #tpu.memory_space<vmem>>, %arg16: memref<8x32xf32, #tpu.memory_space<vmem>>, %arg17: memref<1x4x1x8x8xbf16, #tpu.memory_space<vmem>>, %arg18: memref<8x32xf32, #tpu.memory_space<vmem>>) attributes {dimension_semantics = [#tpu.dimension_semantics<parallel>, #tpu.dimension_semantics<arbitrary>], iteration_bounds = array<i64: 2, 2>, scalar_prefetch = 0 : i64, scratch_operands = 1 : i64, tpu.core_type = #tpu.core_type<tc>, window_params = [{transform_indices = @transform_0, window_bounds = array<i64: 8, 32>}, {pipeline_mode = #tpu.pipeline_mode<synchronous>, transform_indices = @transform_1, window_bounds = array<i64: 1, 8, 8>}, {transform_indices = @transform_2, window_bounds = array<i64: 1, 32, 384>}, {transform_indices = @transform_3, window_bounds = array<i64: 1, 1, 384>}, {transform_indices = @transform_4, window_bounds = array<i64: 1, 4, 32, 32>}, {transform_indices = @transform_5, window_bounds = array<i64: 1, 1, 32>}, {transform_indices = @transform_6, window_bounds = array<i64: 1, 32, 128>}, {transform_indices = @transform_7, window_bounds = array<i64: 1, 1, 128>}, {transform_indices = @transform_8, window_bounds = array<i64: 1, 128, 32>}, {transform_indices = @transform_9, window_bounds = array<i64: 1, 1, 32>}, {transform_indices = @transform_10, window_bounds = array<i64: 1, 1, 32>}, {transform_indices = @transform_11, window_bounds = array<i64: 1, 1, 32>}, {transform_indices = @transform_12, window_bounds = array<i64: 1, 1, 32>}, {transform_indices = @transform_13, window_bounds = array<i64: 1, 1, 32>}, {transform_indices = @transform_14, window_bounds = array<i64: 8, 32>}, {transform_indices = @transform_15, window_bounds = array<i64: 1, 4, 1, 8, 8>}]} {
    %c0_i32 = arith.constant 0 : i32
    %0 = arith.cmpi eq, %arg1, %c0_i32 : i32
    %1 = arith.extui %0 : i1 to i32
    %c0_i32_0 = arith.constant 0 : i32
    %2 = arith.cmpi ne, %1, %c0_i32_0 : i32
    scf.if %2 {
      %c0_114 = arith.constant 0 : index
      %c0_115 = arith.constant 0 : index
      %230 = vector.load %arg2[%c0_114, %c0_115] : memref<8x32xf32, #tpu.memory_space<vmem>>, vector<8x32xf32>
      %c0_116 = arith.constant 0 : index
      %c0_117 = arith.constant 0 : index
      %231 = vector.load %arg18[%c0_116, %c0_117] : memref<8x32xf32, #tpu.memory_space<vmem>>, vector<8x32xf32>
      tpu.vector_store %arg18[%c0_116, %c0_117], %230 {strides = array<i32>} : memref<8x32xf32, #tpu.memory_space<vmem>>, vector<8x32xf32>,
    } else {
    }
    %c0 = arith.constant 0 : index
    %c0_1 = arith.constant 0 : index
    %3 = vector.load %arg18[%c0, %c0_1] : memref<8x32xf32, #tpu.memory_space<vmem>>, vector<8x32xf32>
    %4 = arith.truncf %3 : vector<8x32xf32> to vector<8x32xbf16>
    %c0_2 = arith.constant 0 : index
    %c0_3 = arith.constant 0 : index
    %c0_4 = arith.constant 0 : index
    %5 = vector.load %arg4[%c0_2, %c0_3, %c0_4] : memref<1x32x384xbf16, #tpu.memory_space<vmem>>, vector<1x32x384xbf16>
    %6 = vector.shape_cast %5 : vector<1x32x384xbf16> to vector<32x384xbf16>
    %cst = arith.constant dense<0.000000e+00> : vector<8x384xf32>
    %7 = tpu.matmul %4, %6, %cst {dimension_numbers = #tpu.dot_dimension_numbers<[1], [0], [0], [1], [0, 0, 1, 1], [], []>} : vector<8x32xbf16>, vector<32x384xbf16>, vector<8x384xf32> -> vector<8x384xf32>
    %c0_5 = arith.constant 0 : index
    %c0_6 = arith.constant 0 : index
    %c0_7 = arith.constant 0 : index
    %8 = vector.load %arg5[%c0_5, %c0_6, %c0_7] : memref<1x1x384xf32, #tpu.memory_space<vmem>>, vector<1x1x384xf32>
    %9 = vector.shape_cast %8 : vector<1x1x384xf32> to vector<1x384xf32>
    %10 = vector.broadcast %9 : vector<1x384xf32> to vector<8x384xf32>
    %11 = arith.addf %7, %10 : vector<8x384xf32>
    %12 = arith.truncf %11 : vector<8x384xf32> to vector<8x384xbf16>
    %c0_8 = arith.constant 0 : index
    %c0_9 = arith.constant 0 : index
    %c0_10 = arith.constant 0 : index
    %13 = vector.load %arg3[%c0_8, %c0_9, %c0_10] : memref<1x8x8xf32, #tpu.memory_space<vmem>>, vector<1x8x8xf32>
    %14 = vector.extract_strided_slice %12 {offsets = [0, 0], sizes = [8, 32], strides = [1, 1]} : vector<8x384xbf16> to vector<8x32xbf16>
    %15 = vector.shape_cast %14 : vector<8x32xbf16> to vector<1x8x32xbf16>
    %16 = vector.extract_strided_slice %12 {offsets = [0, 128], sizes = [8, 32], strides = [1, 1]} : vector<8x384xbf16> to vector<8x32xbf16>
    %17 = vector.shape_cast %16 : vector<8x32xbf16> to vector<1x8x32xbf16>
    %18 = vector.extract_strided_slice %12 {offsets = [0, 256], sizes = [8, 32], strides = [1, 1]} : vector<8x384xbf16> to vector<8x32xbf16>
    %19 = vector.shape_cast %18 : vector<8x32xbf16> to vector<1x8x32xbf16>
    "tpu.trace_start"() <{level = 10 : i32, message = "bqd,bkd->bqk"}> : () -> ()
    %cst_11 = arith.constant dense<0.000000e+00> : vector<1x8x8xf32>
    %20 = tpu.matmul %15, %17, %cst_11 {dimension_numbers = #tpu.dot_dimension_numbers<[2], [2], [1], [1], [0, 0, 0, 1, 1, 1], [0], [0]>} : vector<1x8x32xbf16>, vector<1x8x32xbf16>, vector<1x8x8xf32> -> vector<1x8x8xf32>
    "tpu.trace_stop"() : () -> ()
    %21 = arith.addf %20, %13 : vector<1x8x8xf32>
    %cst_12 = arith.constant dense<0xFF800000> : vector<1x8xf32>
    %22 = vector.multi_reduction <maximumf>, %21, %cst_12 [2] : vector<1x8x8xf32> to vector<1x8xf32>
    %23 = vector.shape_cast %22 : vector<1x8xf32> to vector<1x8x1xf32>
    %24 = vector.broadcast %23 : vector<1x8x1xf32> to vector<1x8x8xf32>
    %25 = arith.subf %21, %24 : vector<1x8x8xf32>
    %26 = math.exp %25 : vector<1x8x8xf32>
    %cst_13 = arith.constant dense<0.000000e+00> : vector<1x8xf32>
    %27 = vector.multi_reduction <add>, %26, %cst_13 [2] : vector<1x8x8xf32> to vector<1x8xf32>
    %28 = vector.shape_cast %27 : vector<1x8xf32> to vector<1x8x1xf32>
    %cst_14 = arith.constant 1.000000e+00 : f32
    %29 = vector.broadcast %cst_14 : f32 to vector<1x8x1xf32>
    %30 = arith.divf %29, %28 : vector<1x8x1xf32>
    %31 = vector.broadcast %30 : vector<1x8x1xf32> to vector<1x8x8xf32>
    %32 = arith.mulf %26, %31 : vector<1x8x8xf32>
    %33 = arith.truncf %32 : vector<1x8x8xf32> to vector<1x8x8xbf16>
    %c0_15 = arith.constant 0 : index
    %c0_16 = arith.constant 0 : index
    %c0_17 = arith.constant 0 : index
    %c0_18 = arith.constant 0 : index
    %c0_19 = arith.constant 0 : index
    %34 = vector.load %arg17[%c0_15, %c0_16, %c0_17, %c0_18, %c0_19] : memref<1x4x1x8x8xbf16, #tpu.memory_space<vmem>>, vector<1x1x1x8x8xbf16>
    %35 = vector.shape_cast %34 : vector<1x1x1x8x8xbf16> to vector<1x8x8xbf16>
    %36 = vector.shape_cast %33 : vector<1x8x8xbf16> to vector<1x1x1x8x8xbf16>
    tpu.vector_store %arg17[%c0_15, %c0_16, %c0_17, %c0_18, %c0_19], %36 {strides = array<i32>} : memref<1x4x1x8x8xbf16, #tpu.memory_space<vmem>>, vector<1x1x1x8x8xbf16>,
    %37 = arith.truncf %32 : vector<1x8x8xf32> to vector<1x8x8xbf16>
    "tpu.trace_start"() <{level = 10 : i32, message = "bqk,bkd->bqd"}> : () -> ()
    %cst_20 = arith.constant dense<0.000000e+00> : vector<1x8x32xf32>
    %38 = tpu.matmul %37, %19, %cst_20 {dimension_numbers = #tpu.dot_dimension_numbers<[2], [1], [1], [2], [0, 0, 0, 1, 1, 2], [0], [0]>} : vector<1x8x8xbf16>, vector<1x8x32xbf16>, vector<1x8x32xf32> -> vector<1x8x32xf32>
    "tpu.trace_stop"() : () -> ()
    %39 = vector.shape_cast %38 : vector<1x8x32xf32> to vector<8x32xf32>
    %40 = arith.truncf %39 : vector<8x32xf32> to vector<8x32xbf16>
    %c0_21 = arith.constant 0 : index
    %c0_22 = arith.constant 0 : index
    %c0_23 = arith.constant 0 : index
    %c0_24 = arith.constant 0 : index
    %41 = vector.load %arg6[%c0_21, %c0_22, %c0_23, %c0_24] : memref<1x4x32x32xbf16, #tpu.memory_space<vmem>>, vector<1x1x32x32xbf16>
    %42 = vector.shape_cast %41 : vector<1x1x32x32xbf16> to vector<32x32xbf16>
    %cst_25 = arith.constant dense<0.000000e+00> : vector<8x32xf32>
    %43 = tpu.matmul %40, %42, %cst_25 {dimension_numbers = #tpu.dot_dimension_numbers<[1], [0], [0], [1], [0, 0, 1, 1], [], []>} : vector<8x32xbf16>, vector<32x32xbf16>, vector<8x32xf32> -> vector<8x32xf32>
    %44 = vector.extract_strided_slice %12 {offsets = [0, 32], sizes = [8, 32], strides = [1, 1]} : vector<8x384xbf16> to vector<8x32xbf16>
    %45 = vector.shape_cast %44 : vector<8x32xbf16> to vector<1x8x32xbf16>
    %46 = vector.extract_strided_slice %12 {offsets = [0, 160], sizes = [8, 32], strides = [1, 1]} : vector<8x384xbf16> to vector<8x32xbf16>
    %47 = vector.shape_cast %46 : vector<8x32xbf16> to vector<1x8x32xbf16>
    %48 = vector.extract_strided_slice %12 {offsets = [0, 288], sizes = [8, 32], strides = [1, 1]} : vector<8x384xbf16> to vector<8x32xbf16>
    %49 = vector.shape_cast %48 : vector<8x32xbf16> to vector<1x8x32xbf16>
    "tpu.trace_start"() <{level = 10 : i32, message = "bqd,bkd->bqk"}> : () -> ()
    %cst_26 = arith.constant dense<0.000000e+00> : vector<1x8x8xf32>
    %50 = tpu.matmul %45, %47, %cst_26 {dimension_numbers = #tpu.dot_dimension_numbers<[2], [2], [1], [1], [0, 0, 0, 1, 1, 1], [0], [0]>} : vector<1x8x32xbf16>, vector<1x8x32xbf16>, vector<1x8x8xf32> -> vector<1x8x8xf32>
    "tpu.trace_stop"() : () -> ()
    %51 = arith.addf %50, %13 : vector<1x8x8xf32>
    %cst_27 = arith.constant dense<0xFF800000> : vector<1x8xf32>
    %52 = vector.multi_reduction <maximumf>, %51, %cst_27 [2] : vector<1x8x8xf32> to vector<1x8xf32>
    %53 = vector.shape_cast %52 : vector<1x8xf32> to vector<1x8x1xf32>
    %54 = vector.broadcast %53 : vector<1x8x1xf32> to vector<1x8x8xf32>
    %55 = arith.subf %51, %54 : vector<1x8x8xf32>
    %56 = math.exp %55 : vector<1x8x8xf32>
    %cst_28 = arith.constant dense<0.000000e+00> : vector<1x8xf32>
    %57 = vector.multi_reduction <add>, %56, %cst_28 [2] : vector<1x8x8xf32> to vector<1x8xf32>
    %58 = vector.shape_cast %57 : vector<1x8xf32> to vector<1x8x1xf32>
    %cst_29 = arith.constant 1.000000e+00 : f32
    %59 = vector.broadcast %cst_29 : f32 to vector<1x8x1xf32>
    %60 = arith.divf %59, %58 : vector<1x8x1xf32>
    %61 = vector.broadcast %60 : vector<1x8x1xf32> to vector<1x8x8xf32>
    %62 = arith.mulf %56, %61 : vector<1x8x8xf32>
    %63 = arith.truncf %62 : vector<1x8x8xf32> to vector<1x8x8xbf16>
    %c0_30 = arith.constant 0 : index
    %c1 = arith.constant 1 : index
    %c0_31 = arith.constant 0 : index
    %c0_32 = arith.constant 0 : index
    %c0_33 = arith.constant 0 : index
    %64 = vector.load %arg17[%c0_30, %c1, %c0_31, %c0_32, %c0_33] : memref<1x4x1x8x8xbf16, #tpu.memory_space<vmem>>, vector<1x1x1x8x8xbf16>
    %65 = vector.shape_cast %64 : vector<1x1x1x8x8xbf16> to vector<1x8x8xbf16>
    %66 = vector.shape_cast %63 : vector<1x8x8xbf16> to vector<1x1x1x8x8xbf16>
    tpu.vector_store %arg17[%c0_30, %c1, %c0_31, %c0_32, %c0_33], %66 {strides = array<i32>} : memref<1x4x1x8x8xbf16, #tpu.memory_space<vmem>>, vector<1x1x1x8x8xbf16>,
    %67 = arith.truncf %62 : vector<1x8x8xf32> to vector<1x8x8xbf16>
    "tpu.trace_start"() <{level = 10 : i32, message = "bqk,bkd->bqd"}> : () -> ()
    %cst_34 = arith.constant dense<0.000000e+00> : vector<1x8x32xf32>
    %68 = tpu.matmul %67, %49, %cst_34 {dimension_numbers = #tpu.dot_dimension_numbers<[2], [1], [1], [2], [0, 0, 0, 1, 1, 2], [0], [0]>} : vector<1x8x8xbf16>, vector<1x8x32xbf16>, vector<1x8x32xf32> -> vector<1x8x32xf32>
    "tpu.trace_stop"() : () -> ()
    %69 = vector.shape_cast %68 : vector<1x8x32xf32> to vector<8x32xf32>
    %70 = arith.truncf %69 : vector<8x32xf32> to vector<8x32xbf16>
    %c0_35 = arith.constant 0 : index
    %c1_36 = arith.constant 1 : index
    %c0_37 = arith.constant 0 : index
    %c0_38 = arith.constant 0 : index
    %71 = vector.load %arg6[%c0_35, %c1_36, %c0_37, %c0_38] : memref<1x4x32x32xbf16, #tpu.memory_space<vmem>>, vector<1x1x32x32xbf16>
    %72 = vector.shape_cast %71 : vector<1x1x32x32xbf16> to vector<32x32xbf16>
    %cst_39 = arith.constant dense<0.000000e+00> : vector<8x32xf32>
    %73 = tpu.matmul %70, %72, %cst_39 {dimension_numbers = #tpu.dot_dimension_numbers<[1], [0], [0], [1], [0, 0, 1, 1], [], []>} : vector<8x32xbf16>, vector<32x32xbf16>, vector<8x32xf32> -> vector<8x32xf32>
    %74 = arith.addf %43, %73 : vector<8x32xf32>
    %75 = vector.extract_strided_slice %12 {offsets = [0, 64], sizes = [8, 32], strides = [1, 1]} : vector<8x384xbf16> to vector<8x32xbf16>
    %76 = vector.shape_cast %75 : vector<8x32xbf16> to vector<1x8x32xbf16>
    %77 = vector.extract_strided_slice %12 {offsets = [0, 192], sizes = [8, 32], strides = [1, 1]} : vector<8x384xbf16> to vector<8x32xbf16>
    %78 = vector.shape_cast %77 : vector<8x32xbf16> to vector<1x8x32xbf16>
    %79 = vector.extract_strided_slice %12 {offsets = [0, 320], sizes = [8, 32], strides = [1, 1]} : vector<8x384xbf16> to vector<8x32xbf16>
    %80 = vector.shape_cast %79 : vector<8x32xbf16> to vector<1x8x32xbf16>
    "tpu.trace_start"() <{level = 10 : i32, message = "bqd,bkd->bqk"}> : () -> ()
    %cst_40 = arith.constant dense<0.000000e+00> : vector<1x8x8xf32>
    %81 = tpu.matmul %76, %78, %cst_40 {dimension_numbers = #tpu.dot_dimension_numbers<[2], [2], [1], [1], [0, 0, 0, 1, 1, 1], [0], [0]>} : vector<1x8x32xbf16>, vector<1x8x32xbf16>, vector<1x8x8xf32> -> vector<1x8x8xf32>
    "tpu.trace_stop"() : () -> ()
    %82 = arith.addf %81, %13 : vector<1x8x8xf32>
    %cst_41 = arith.constant dense<0xFF800000> : vector<1x8xf32>
    %83 = vector.multi_reduction <maximumf>, %82, %cst_41 [2] : vector<1x8x8xf32> to vector<1x8xf32>
    %84 = vector.shape_cast %83 : vector<1x8xf32> to vector<1x8x1xf32>
    %85 = vector.broadcast %84 : vector<1x8x1xf32> to vector<1x8x8xf32>
    %86 = arith.subf %82, %85 : vector<1x8x8xf32>
    %87 = math.exp %86 : vector<1x8x8xf32>
    %cst_42 = arith.constant dense<0.000000e+00> : vector<1x8xf32>
    %88 = vector.multi_reduction <add>, %87, %cst_42 [2] : vector<1x8x8xf32> to vector<1x8xf32>
    %89 = vector.shape_cast %88 : vector<1x8xf32> to vector<1x8x1xf32>
    %cst_43 = arith.constant 1.000000e+00 : f32
    %90 = vector.broadcast %cst_43 : f32 to vector<1x8x1xf32>
    %91 = arith.divf %90, %89 : vector<1x8x1xf32>
    %92 = vector.broadcast %91 : vector<1x8x1xf32> to vector<1x8x8xf32>
    %93 = arith.mulf %87, %92 : vector<1x8x8xf32>
    %94 = arith.truncf %93 : vector<1x8x8xf32> to vector<1x8x8xbf16>
    %c0_44 = arith.constant 0 : index
    %c2 = arith.constant 2 : index
    %c0_45 = arith.constant 0 : index
    %c0_46 = arith.constant 0 : index
    %c0_47 = arith.constant 0 : index
    %95 = vector.load %arg17[%c0_44, %c2, %c0_45, %c0_46, %c0_47] : memref<1x4x1x8x8xbf16, #tpu.memory_space<vmem>>, vector<1x1x1x8x8xbf16>
    %96 = vector.shape_cast %95 : vector<1x1x1x8x8xbf16> to vector<1x8x8xbf16>
    %97 = vector.shape_cast %94 : vector<1x8x8xbf16> to vector<1x1x1x8x8xbf16>
    tpu.vector_store %arg17[%c0_44, %c2, %c0_45, %c0_46, %c0_47], %97 {strides = array<i32>} : memref<1x4x1x8x8xbf16, #tpu.memory_space<vmem>>, vector<1x1x1x8x8xbf16>,
    %98 = arith.truncf %93 : vector<1x8x8xf32> to vector<1x8x8xbf16>
    "tpu.trace_start"() <{level = 10 : i32, message = "bqk,bkd->bqd"}> : () -> ()
    %cst_48 = arith.constant dense<0.000000e+00> : vector<1x8x32xf32>
    %99 = tpu.matmul %98, %80, %cst_48 {dimension_numbers = #tpu.dot_dimension_numbers<[2], [1], [1], [2], [0, 0, 0, 1, 1, 2], [0], [0]>} : vector<1x8x8xbf16>, vector<1x8x32xbf16>, vector<1x8x32xf32> -> vector<1x8x32xf32>
    "tpu.trace_stop"() : () -> ()
    %100 = vector.shape_cast %99 : vector<1x8x32xf32> to vector<8x32xf32>
    %101 = arith.truncf %100 : vector<8x32xf32> to vector<8x32xbf16>
    %c0_49 = arith.constant 0 : index
    %c2_50 = arith.constant 2 : index
    %c0_51 = arith.constant 0 : index
    %c0_52 = arith.constant 0 : index
    %102 = vector.load %arg6[%c0_49, %c2_50, %c0_51, %c0_52] : memref<1x4x32x32xbf16, #tpu.memory_space<vmem>>, vector<1x1x32x32xbf16>
    %103 = vector.shape_cast %102 : vector<1x1x32x32xbf16> to vector<32x32xbf16>
    %cst_53 = arith.constant dense<0.000000e+00> : vector<8x32xf32>
    %104 = tpu.matmul %101, %103, %cst_53 {dimension_numbers = #tpu.dot_dimension_numbers<[1], [0], [0], [1], [0, 0, 1, 1], [], []>} : vector<8x32xbf16>, vector<32x32xbf16>, vector<8x32xf32> -> vector<8x32xf32>
    %105 = arith.addf %74, %104 : vector<8x32xf32>
    %106 = vector.extract_strided_slice %12 {offsets = [0, 96], sizes = [8, 32], strides = [1, 1]} : vector<8x384xbf16> to vector<8x32xbf16>
    %107 = vector.shape_cast %106 : vector<8x32xbf16> to vector<1x8x32xbf16>
    %108 = vector.extract_strided_slice %12 {offsets = [0, 224], sizes = [8, 32], strides = [1, 1]} : vector<8x384xbf16> to vector<8x32xbf16>
    %109 = vector.shape_cast %108 : vector<8x32xbf16> to vector<1x8x32xbf16>
    %110 = vector.extract_strided_slice %12 {offsets = [0, 352], sizes = [8, 32], strides = [1, 1]} : vector<8x384xbf16> to vector<8x32xbf16>
    %111 = vector.shape_cast %110 : vector<8x32xbf16> to vector<1x8x32xbf16>
    "tpu.trace_start"() <{level = 10 : i32, message = "bqd,bkd->bqk"}> : () -> ()
    %cst_54 = arith.constant dense<0.000000e+00> : vector<1x8x8xf32>
    %112 = tpu.matmul %107, %109, %cst_54 {dimension_numbers = #tpu.dot_dimension_numbers<[2], [2], [1], [1], [0, 0, 0, 1, 1, 1], [0], [0]>} : vector<1x8x32xbf16>, vector<1x8x32xbf16>, vector<1x8x8xf32> -> vector<1x8x8xf32>
    "tpu.trace_stop"() : () -> ()
    %113 = arith.addf %112, %13 : vector<1x8x8xf32>
    %cst_55 = arith.constant dense<0xFF800000> : vector<1x8xf32>
    %114 = vector.multi_reduction <maximumf>, %113, %cst_55 [2] : vector<1x8x8xf32> to vector<1x8xf32>
    %115 = vector.shape_cast %114 : vector<1x8xf32> to vector<1x8x1xf32>
    %116 = vector.broadcast %115 : vector<1x8x1xf32> to vector<1x8x8xf32>
    %117 = arith.subf %113, %116 : vector<1x8x8xf32>
    %118 = math.exp %117 : vector<1x8x8xf32>
    %cst_56 = arith.constant dense<0.000000e+00> : vector<1x8xf32>
    %119 = vector.multi_reduction <add>, %118, %cst_56 [2] : vector<1x8x8xf32> to vector<1x8xf32>
    %120 = vector.shape_cast %119 : vector<1x8xf32> to vector<1x8x1xf32>
    %cst_57 = arith.constant 1.000000e+00 : f32
    %121 = vector.broadcast %cst_57 : f32 to vector<1x8x1xf32>
    %122 = arith.divf %121, %120 : vector<1x8x1xf32>
    %123 = vector.broadcast %122 : vector<1x8x1xf32> to vector<1x8x8xf32>
    %124 = arith.mulf %118, %123 : vector<1x8x8xf32>
    %125 = arith.truncf %124 : vector<1x8x8xf32> to vector<1x8x8xbf16>
    %c0_58 = arith.constant 0 : index
    %c3 = arith.constant 3 : index
    %c0_59 = arith.constant 0 : index
    %c0_60 = arith.constant 0 : index
    %c0_61 = arith.constant 0 : index
    %126 = vector.load %arg17[%c0_58, %c3, %c0_59, %c0_60, %c0_61] : memref<1x4x1x8x8xbf16, #tpu.memory_space<vmem>>, vector<1x1x1x8x8xbf16>
    %127 = vector.shape_cast %126 : vector<1x1x1x8x8xbf16> to vector<1x8x8xbf16>
    %128 = vector.shape_cast %125 : vector<1x8x8xbf16> to vector<1x1x1x8x8xbf16>
    tpu.vector_store %arg17[%c0_58, %c3, %c0_59, %c0_60, %c0_61], %128 {strides = array<i32>} : memref<1x4x1x8x8xbf16, #tpu.memory_space<vmem>>, vector<1x1x1x8x8xbf16>,
    %129 = arith.truncf %124 : vector<1x8x8xf32> to vector<1x8x8xbf16>
    "tpu.trace_start"() <{level = 10 : i32, message = "bqk,bkd->bqd"}> : () -> ()
    %cst_62 = arith.constant dense<0.000000e+00> : vector<1x8x32xf32>
    %130 = tpu.matmul %129, %111, %cst_62 {dimension_numbers = #tpu.dot_dimension_numbers<[2], [1], [1], [2], [0, 0, 0, 1, 1, 2], [0], [0]>} : vector<1x8x8xbf16>, vector<1x8x32xbf16>, vector<1x8x32xf32> -> vector<1x8x32xf32>
    "tpu.trace_stop"() : () -> ()
    %131 = vector.shape_cast %130 : vector<1x8x32xf32> to vector<8x32xf32>
    %132 = arith.truncf %131 : vector<8x32xf32> to vector<8x32xbf16>
    %c0_63 = arith.constant 0 : index
    %c3_64 = arith.constant 3 : index
    %c0_65 = arith.constant 0 : index
    %c0_66 = arith.constant 0 : index
    %133 = vector.load %arg6[%c0_63, %c3_64, %c0_65, %c0_66] : memref<1x4x32x32xbf16, #tpu.memory_space<vmem>>, vector<1x1x32x32xbf16>
    %134 = vector.shape_cast %133 : vector<1x1x32x32xbf16> to vector<32x32xbf16>
    %cst_67 = arith.constant dense<0.000000e+00> : vector<8x32xf32>
    %135 = tpu.matmul %132, %134, %cst_67 {dimension_numbers = #tpu.dot_dimension_numbers<[1], [0], [0], [1], [0, 0, 1, 1], [], []>} : vector<8x32xbf16>, vector<32x32xbf16>, vector<8x32xf32> -> vector<8x32xf32>
    %136 = arith.addf %105, %135 : vector<8x32xf32>
    %c0_68 = arith.constant 0 : index
    %c0_69 = arith.constant 0 : index
    %c0_70 = arith.constant 0 : index
    %137 = vector.load %arg7[%c0_68, %c0_69, %c0_70] : memref<1x1x32xf32, #tpu.memory_space<vmem>>, vector<1x1x32xf32>
    %138 = vector.shape_cast %137 : vector<1x1x32xf32> to vector<1x32xf32>
    %139 = vector.broadcast %138 : vector<1x32xf32> to vector<8x32xf32>
    %140 = arith.addf %136, %139 : vector<8x32xf32>
    %141 = arith.addf %3, %140 : vector<8x32xf32>
    %c0_71 = arith.constant 0 : index
    %c0_72 = arith.constant 0 : index
    %c0_73 = arith.constant 0 : index
    %142 = vector.load %arg12[%c0_71, %c0_72, %c0_73] : memref<1x1x32xf32, #tpu.memory_space<vmem>>, vector<1x1x32xf32>
    %143 = vector.shape_cast %142 : vector<1x1x32xf32> to vector<1x32xf32>
    %c0_74 = arith.constant 0 : index
    %c0_75 = arith.constant 0 : index
    %c0_76 = arith.constant 0 : index
    %144 = vector.load %arg13[%c0_74, %c0_75, %c0_76] : memref<1x1x32xf32, #tpu.memory_space<vmem>>, vector<1x1x32xf32>
    %145 = vector.shape_cast %144 : vector<1x1x32xf32> to vector<1x32xf32>
    %cst_77 = arith.constant dense<0.000000e+00> : vector<8xf32>
    %146 = vector.multi_reduction <add>, %141, %cst_77 [1] : vector<8x32xf32> to vector<8xf32>
    %147 = vector.shape_cast %146 : vector<8xf32> to vector<8x1xf32>
    %cst_78 = arith.constant 3.200000e+01 : f32
    %148 = vector.broadcast %cst_78 : f32 to vector<8x1xf32>
    %149 = arith.divf %147, %148 : vector<8x1xf32>
    %150 = vector.broadcast %149 : vector<8x1xf32> to vector<8x32xf32>
    %151 = arith.subf %141, %150 : vector<8x32xf32>
    %152 = arith.mulf %151, %151 : vector<8x32xf32>
    %cst_79 = arith.constant dense<0.000000e+00> : vector<8xf32>
    %153 = vector.multi_reduction <add>, %152, %cst_79 [1] : vector<8x32xf32> to vector<8xf32>
    %154 = vector.shape_cast %153 : vector<8xf32> to vector<8x1xf32>
    %cst_80 = arith.constant 3.200000e+01 : f32
    %155 = vector.broadcast %cst_80 : f32 to vector<8x1xf32>
    %156 = arith.divf %154, %155 : vector<8x1xf32>
    %157 = vector.broadcast %149 : vector<8x1xf32> to vector<8x32xf32>
    %158 = arith.subf %141, %157 : vector<8x32xf32>
    %cst_81 = arith.constant 9.99999971E-10 : f32
    %159 = vector.broadcast %cst_81 : f32 to vector<8x1xf32>
    %160 = arith.addf %156, %159 : vector<8x1xf32>
    %161 = math.rsqrt %160 : vector<8x1xf32>
    %162 = vector.broadcast %161 : vector<8x1xf32> to vector<8x32xf32>
    %163 = arith.mulf %158, %162 : vector<8x32xf32>
    %164 = vector.broadcast %143 : vector<1x32xf32> to vector<8x32xf32>
    %165 = arith.mulf %163, %164 : vector<8x32xf32>
    %166 = vector.broadcast %145 : vector<1x32xf32> to vector<8x32xf32>
    %167 = arith.addf %165, %166 : vector<8x32xf32>
    %168 = arith.truncf %167 : vector<8x32xf32> to vector<8x32xbf16>
    %c0_82 = arith.constant 0 : index
    %c0_83 = arith.constant 0 : index
    %c0_84 = arith.constant 0 : index
    %169 = vector.load %arg8[%c0_82, %c0_83, %c0_84] : memref<1x32x128xbf16, #tpu.memory_space<vmem>>, vector<1x32x128xbf16>
    %170 = vector.shape_cast %169 : vector<1x32x128xbf16> to vector<32x128xbf16>
    %cst_85 = arith.constant dense<0.000000e+00> : vector<8x128xf32>
    %171 = tpu.matmul %168, %170, %cst_85 {dimension_numbers = #tpu.dot_dimension_numbers<[1], [0], [0], [1], [0, 0, 1, 1], [], []>} : vector<8x32xbf16>, vector<32x128xbf16>, vector<8x128xf32> -> vector<8x128xf32>
    %c0_86 = arith.constant 0 : index
    %c0_87 = arith.constant 0 : index
    %c0_88 = arith.constant 0 : index
    %172 = vector.load %arg9[%c0_86, %c0_87, %c0_88] : memref<1x1x128xf32, #tpu.memory_space<vmem>>, vector<1x1x128xf32>
    %173 = vector.shape_cast %172 : vector<1x1x128xf32> to vector<1x128xf32>
    %174 = vector.broadcast %173 : vector<1x128xf32> to vector<8x128xf32>
    %175 = arith.addf %171, %174 : vector<8x128xf32>
    %cst_89 = arith.constant 5.000000e-01 : f32
    %176 = vector.broadcast %cst_89 : f32 to vector<8x128xf32>
    %177 = arith.mulf %176, %175 : vector<8x128xf32>
    %cst_90 = arith.constant 4.471500e-02 : f32
    %178 = vector.broadcast %cst_90 : f32 to vector<8x128xf32>
    %179 = arith.mulf %178, %175 : vector<8x128xf32>
    %180 = arith.mulf %179, %175 : vector<8x128xf32>
    %181 = arith.mulf %180, %175 : vector<8x128xf32>
    %182 = arith.addf %175, %181 : vector<8x128xf32>
    %cst_91 = arith.constant 0.797884583 : f32
    %183 = vector.broadcast %cst_91 : f32 to vector<8x128xf32>
    %184 = arith.mulf %183, %182 : vector<8x128xf32>
    %185 = math.tanh %184 : vector<8x128xf32>
    %cst_92 = arith.constant 1.000000e+00 : f32
    %186 = vector.broadcast %cst_92 : f32 to vector<8x128xf32>
    %187 = arith.addf %186, %185 : vector<8x128xf32>
    %188 = arith.mulf %177, %187 : vector<8x128xf32>
    %189 = arith.truncf %188 : vector<8x128xf32> to vector<8x128xbf16>
    %c0_93 = arith.constant 0 : index
    %c0_94 = arith.constant 0 : index
    %c0_95 = arith.constant 0 : index
    %190 = vector.load %arg10[%c0_93, %c0_94, %c0_95] : memref<1x128x32xbf16, #tpu.memory_space<vmem>>, vector<1x128x32xbf16>
    %191 = vector.shape_cast %190 : vector<1x128x32xbf16> to vector<128x32xbf16>
    %cst_96 = arith.constant dense<0.000000e+00> : vector<8x32xf32>
    %192 = tpu.matmul %189, %191, %cst_96 {dimension_numbers = #tpu.dot_dimension_numbers<[1], [0], [0], [1], [0, 0, 1, 1], [], []>} : vector<8x128xbf16>, vector<128x32xbf16>, vector<8x32xf32> -> vector<8x32xf32>
    %c0_97 = arith.constant 0 : index
    %c0_98 = arith.constant 0 : index
    %c0_99 = arith.constant 0 : index
    %193 = vector.load %arg11[%c0_97, %c0_98, %c0_99] : memref<1x1x32xf32, #tpu.memory_space<vmem>>, vector<1x1x32xf32>
    %194 = vector.shape_cast %193 : vector<1x1x32xf32> to vector<1x32xf32>
    %195 = vector.broadcast %194 : vector<1x32xf32> to vector<8x32xf32>
    %196 = arith.addf %192, %195 : vector<8x32xf32>
    %197 = arith.addf %167, %196 : vector<8x32xf32>
    %c0_100 = arith.constant 0 : index
    %c0_101 = arith.constant 0 : index
    %c0_102 = arith.constant 0 : index
    %198 = vector.load %arg14[%c0_100, %c0_101, %c0_102] : memref<1x1x32xf32, #tpu.memory_space<vmem>>, vector<1x1x32xf32>
    %199 = vector.shape_cast %198 : vector<1x1x32xf32> to vector<1x32xf32>
    %c0_103 = arith.constant 0 : index
    %c0_104 = arith.constant 0 : index
    %c0_105 = arith.constant 0 : index
    %200 = vector.load %arg15[%c0_103, %c0_104, %c0_105] : memref<1x1x32xf32, #tpu.memory_space<vmem>>, vector<1x1x32xf32>
    %201 = vector.shape_cast %200 : vector<1x1x32xf32> to vector<1x32xf32>
    %cst_106 = arith.constant dense<0.000000e+00> : vector<8xf32>
    %202 = vector.multi_reduction <add>, %197, %cst_106 [1] : vector<8x32xf32> to vector<8xf32>
    %203 = vector.shape_cast %202 : vector<8xf32> to vector<8x1xf32>
    %cst_107 = arith.constant 3.200000e+01 : f32
    %204 = vector.broadcast %cst_107 : f32 to vector<8x1xf32>
    %205 = arith.divf %203, %204 : vector<8x1xf32>
    %206 = vector.broadcast %205 : vector<8x1xf32> to vector<8x32xf32>
    %207 = arith.subf %197, %206 : vector<8x32xf32>
    %208 = arith.mulf %207, %207 : vector<8x32xf32>
    %cst_108 = arith.constant dense<0.000000e+00> : vector<8xf32>
    %209 = vector.multi_reduction <add>, %208, %cst_108 [1] : vector<8x32xf32> to vector<8xf32>
    %210 = vector.shape_cast %209 : vector<8xf32> to vector<8x1xf32>
    %cst_109 = arith.constant 3.200000e+01 : f32
    %211 = vector.broadcast %cst_109 : f32 to vector<8x1xf32>
    %212 = arith.divf %210, %211 : vector<8x1xf32>
    %213 = vector.broadcast %205 : vector<8x1xf32> to vector<8x32xf32>
    %214 = arith.subf %197, %213 : vector<8x32xf32>
    %cst_110 = arith.constant 9.99999971E-10 : f32
    %215 = vector.broadcast %cst_110 : f32 to vector<8x1xf32>
    %216 = arith.addf %212, %215 : vector<8x1xf32>
    %217 = math.rsqrt %216 : vector<8x1xf32>
    %218 = vector.broadcast %217 : vector<8x1xf32> to vector<8x32xf32>
    %219 = arith.mulf %214, %218 : vector<8x32xf32>
    %220 = vector.broadcast %199 : vector<1x32xf32> to vector<8x32xf32>
    %221 = arith.mulf %219, %220 : vector<8x32xf32>
    %222 = vector.broadcast %201 : vector<1x32xf32> to vector<8x32xf32>
    %223 = arith.addf %221, %222 : vector<8x32xf32>
    %c1_i32 = arith.constant 1 : i32
    %224 = arith.cmpi slt, %arg1, %c1_i32 : i32
    %225 = arith.extui %224 : i1 to i32
    %c0_i32_111 = arith.constant 0 : i32
    %226 = arith.cmpi ne, %225, %c0_i32_111 : i32
    scf.if %226 {
      %c0_114 = arith.constant 0 : index
      %c0_115 = arith.constant 0 : index
      %230 = vector.load %arg18[%c0_114, %c0_115] : memref<8x32xf32, #tpu.memory_space<vmem>>, vector<8x32xf32>
      tpu.vector_store %arg18[%c0_114, %c0_115], %223 {strides = array<i32>} : memref<8x32xf32, #tpu.memory_space<vmem>>, vector<8x32xf32>,
    } else {
    }
    %c1_i32_112 = arith.constant 1 : i32
    %227 = arith.cmpi eq, %arg1, %c1_i32_112 : i32
    %228 = arith.extui %227 : i1 to i32
    %c0_i32_113 = arith.constant 0 : i32
    %229 = arith.cmpi ne, %228, %c0_i32_113 : i32
    scf.if %229 {
      %c0_114 = arith.constant 0 : index
      %c0_115 = arith.constant 0 : index
      %230 = vector.load %arg16[%c0_114, %c0_115] : memref<8x32xf32, #tpu.memory_space<vmem>>, vector<8x32xf32>
      tpu.vector_store %arg16[%c0_114, %c0_115], %223 {strides = array<i32>} : memref<8x32xf32, #tpu.memory_space<vmem>>, vector<8x32xf32>,
    } else {
    }
    return
  }
  func.func @transform_0(%arg0: i32, %arg1: i32) -> (i32, i32) {
    %c0_i32 = arith.constant 0 : i32
    %c0_i32_0 = arith.constant 0 : i32
    return %arg0, %c0_i32 : i32, i32
  }
  func.func @transform_1(%arg0: i32, %arg1: i32) -> (i32, i32, i32) {
    %c0_i32 = arith.constant 0 : i32
    %c0_i32_0 = arith.constant 0 : i32
    %c0_i32_1 = arith.constant 0 : i32
    %c0_i32_2 = arith.constant 0 : i32
    return %c0_i32, %c0_i32_0, %c0_i32_1 : i32, i32, i32
  }
  func.func @transform_2(%arg0: i32, %arg1: i32) -> (i32, i32, i32) {
    %c0_i32 = arith.constant 0 : i32
    %c0_i32_0 = arith.constant 0 : i32
    %c0_i32_1 = arith.constant 0 : i32
    return %arg1, %c0_i32, %c0_i32_0 : i32, i32, i32
  }
  func.func @transform_3(%arg0: i32, %arg1: i32) -> (i32, i32, i32) {
    %c0_i32 = arith.constant 0 : i32
    %c0_i32_0 = arith.constant 0 : i32
    %c0_i32_1 = arith.constant 0 : i32
    return %arg1, %c0_i32, %c0_i32_0 : i32, i32, i32
  }
  func.func @transform_4(%arg0: i32, %arg1: i32) -> (i32, i32, i32, i32) {
    %c0_i32 = arith.constant 0 : i32
    %c0_i32_0 = arith.constant 0 : i32
    %c0_i32_1 = arith.constant 0 : i32
    %c0_i32_2 = arith.constant 0 : i32
    return %arg1, %c0_i32, %c0_i32_0, %c0_i32_1 : i32, i32, i32, i32
  }
  func.func @transform_5(%arg0: i32, %arg1: i32) -> (i32, i32, i32) {
    %c0_i32 = arith.constant 0 : i32
    %c0_i32_0 = arith.constant 0 : i32
    %c0_i32_1 = arith.constant 0 : i32
    return %arg1, %c0_i32, %c0_i32_0 : i32, i32, i32
  }
  func.func @transform_6(%arg0: i32, %arg1: i32) -> (i32, i32, i32) {
    %c0_i32 = arith.constant 0 : i32
    %c0_i32_0 = arith.constant 0 : i32
    %c0_i32_1 = arith.constant 0 : i32
    return %arg1, %c0_i32, %c0_i32_0 : i32, i32, i32
  }
  func.func @transform_7(%arg0: i32, %arg1: i32) -> (i32, i32, i32) {
    %c0_i32 = arith.constant 0 : i32
    %c0_i32_0 = arith.constant 0 : i32
    %c0_i32_1 = arith.constant 0 : i32
    return %arg1, %c0_i32, %c0_i32_0 : i32, i32, i32
  }
  func.func @transform_8(%arg0: i32, %arg1: i32) -> (i32, i32, i32) {
    %c0_i32 = arith.constant 0 : i32
    %c0_i32_0 = arith.constant 0 : i32
    %c0_i32_1 = arith.constant 0 : i32
    return %arg1, %c0_i32, %c0_i32_0 : i32, i32, i32
  }
  func.func @transform_9(%arg0: i32, %arg1: i32) -> (i32, i32, i32) {
    %c0_i32 = arith.constant 0 : i32
    %c0_i32_0 = arith.constant 0 : i32
    %c0_i32_1 = arith.constant 0 : i32
    return %arg1, %c0_i32, %c0_i32_0 : i32, i32, i32
  }
  func.func @transform_10(%arg0: i32, %arg1: i32) -> (i32, i32, i32) {
    %c0_i32 = arith.constant 0 : i32
    %c0_i32_0 = arith.constant 0 : i32
    %c0_i32_1 = arith.constant 0 : i32
    return %arg1, %c0_i32, %c0_i32_0 : i32, i32, i32
  }
  func.func @transform_11(%arg0: i32, %arg1: i32) -> (i32, i32, i32) {
    %c0_i32 = arith.constant 0 : i32
    %c0_i32_0 = arith.constant 0 : i32
    %c0_i32_1 = arith.constant 0 : i32
    return %arg1, %c0_i32, %c0_i32_0 : i32, i32, i32
  }
  func.func @transform_12(%arg0: i32, %arg1: i32) -> (i32, i32, i32) {
    %c0_i32 = arith.constant 0 : i32
    %c0_i32_0 = arith.constant 0 : i32
    %c0_i32_1 = arith.constant 0 : i32
    return %arg1, %c0_i32, %c0_i32_0 : i32, i32, i32
  }
  func.func @transform_13(%arg0: i32, %arg1: i32) -> (i32, i32, i32) {
    %c0_i32 = arith.constant 0 : i32
    %c0_i32_0 = arith.constant 0 : i32
    %c0_i32_1 = arith.constant 0 : i32
    return %arg1, %c0_i32, %c0_i32_0 : i32, i32, i32
  }
  func.func @transform_14(%arg0: i32, %arg1: i32) -> (i32, i32) {
    %c0_i32 = arith.constant 0 : i32
    %c0_i32_0 = arith.constant 0 : i32
    return %arg0, %c0_i32 : i32, i32
  }
  func.func @transform_15(%arg0: i32, %arg1: i32) -> (i32, i32, i32, i32, i32) {
    %c0_i32 = arith.constant 0 : i32
    %c0_i32_0 = arith.constant 0 : i32
    %c0_i32_1 = arith.constant 0 : i32
    %c0_i32_2 = arith.constant 0 : i32
    return %arg1, %c0_i32, %arg0, %c0_i32_0, %c0_i32_1 : i32, i32, i32, i32, i32
  }
}

</mosaic_0001>

<llo_original>
// kernel: tpu_custom_call.1
$region0: #{tpu_custom_call.1}
  #allocation0 [shape = 'u32[]', space=smem, size = 0x4, offset = 0x4, fixed_abs, tag = 'smem constant byte address 0x4 - core index']
  #allocation1 [shape = 'u32[144,128]{1,0:T(1,128)}', space=vmem, size = 0x12000, scoped, tag = 'internal scratch']
  #allocation2 [shape = 'f32[8,32]{1,0:T(8,128)}', space=vmem, size = 0x1000, scoped, tag = 'scratch operand']
  %s0 = inlined_call_operand.hbm [shape: f32[16,32], index: 0, kind: input, shape index: {}]
  %s1 = inlined_call_operand.hbm [shape: f32[1,8,8], index: 1, kind: input, shape index: {}]
  %s2 = inlined_call_operand.hbm [shape: bf16[2,32,384], index: 2, kind: input, shape index: {}]
  %s3 = inlined_call_operand.vmem [shape: f32[2,1,384], index: 3, kind: input, shape index: {}]
  %s4 = inlined_call_operand.vmem [shape: bf16[2,4,32,32], index: 4, kind: input, shape index: {}]
  %s5 = inlined_call_operand.vmem [shape: f32[2,1,32], index: 5, kind: input, shape index: {}]
  %s6 = inlined_call_operand.vmem [shape: bf16[2,32,128], index: 6, kind: input, shape index: {}]
  %s7 = inlined_call_operand.vmem [shape: f32[2,1,128], index: 7, kind: input, shape index: {}]
  %s8 = inlined_call_operand.vmem [shape: bf16[2,128,32], index: 8, kind: input, shape index: {}]
  %s9 = inlined_call_operand.vmem [shape: f32[2,1,32], index: 9, kind: input, shape index: {}]
  %s10 = inlined_call_operand.vmem [shape: f32[2,1,32], index: 10, kind: input, shape index: {}]
  %s11 = inlined_call_operand.vmem [shape: f32[2,1,32], index: 11, kind: input, shape index: {}]
  %s12 = inlined_call_operand.vmem [shape: f32[2,1,32], index: 12, kind: input, shape index: {}]
  %s13 = inlined_call_operand.vmem [shape: f32[2,1,32], index: 13, kind: input, shape index: {}]
  %s14 = inlined_call_operand.hbm [shape: f32[16,32], index: 14, kind: output, shape index: {0}]
  %s15 = inlined_call_operand.hbm [shape: bf16[2,4,2,8,8], index: 15, kind: output, shape index: {1}]
  %16 = xla_tuple %s14, %s15
  %s17 = sld [smem:[#allocation0]]
  $region121: #{tpu_custom_call.1} parent=0
    _
  %s19 = ssub.s32 1, %s17
  %s20 = scalar_select 0, %s19, %s17
  $region1: #{tpu_custom_call.1} parent=0
    #allocation3 [shape = 'u8[8192]{0}', space=vmem, size = 0x2000, scoped, tag = 'input window, operand 0']
    #allocation4 [shape = 's32[2]{0}', space=sflag, size = 0x8, scoped, tag = 'scoped memory for tpu_custom_call.1']
    #allocation5 [shape = 's32[2]{0}', space=sflag, size = 0x8, scoped, tag = 'scoped memory for tpu_custom_call.1']
    #allocation6 [shape = 'u8[4096]{0}', space=vmem, size = 0x1000, scoped, tag = 'input window, operand 1, single buffered']
    #allocation7 [shape = 's32[1]{0}', space=sflag, size = 0x4, scoped, tag = 'scoped memory for tpu_custom_call.1']
    #allocation8 [shape = 'u8[49152]{0}', space=vmem, size = 0xc000, scoped, tag = 'input window, operand 2']
    #allocation9 [shape = 'u8[8192]{0}', space=vmem, size = 0x2000, scoped, tag = 'output window, operand 0']
    #allocation10 [shape = 'u8[16384]{0}', space=vmem, size = 0x4000, scoped, tag = 'output window, operand 1']
    #allocation11 [shape = 's32[2]{0}', space=sflag, size = 0x8, scoped, tag = 'scoped memory for tpu_custom_call.1']
    %21 = vsyncpa [#allocation4], 0
    %s22 = scalar_lea.sflag [#allocation4], 1
    %23 = vsyncpa %s22, 0
    %24 = vsyncpa [#allocation7], 0
    %25 = vsyncpa [#allocation5], 0
    %s26 = scalar_lea.sflag [#allocation5], 1
    %27 = vsyncpa %s26, 0
    %28 = vsyncpa [#allocation11], 0
    %s29 = scalar_lea.sflag [#allocation11], 1
    %30 = vsyncpa %s29, 0
    loop: start=0, step=1, limit=6
    $region2: #{tpu_custom_call.1} parent=1 // loop_pre_header
      _
    $region3: #{tpu_custom_call.1} parent=1 // loop_header
      %s32 = sphi 0, %s36
      %p33 = scmp.ge.s32.totalorder %s32, 6
      %s39 = sphi 0, %s51
      %s40 = sphi 0, %s47
      %s41 = sphi 0, %s39
      %s42 = sphi 0, %s40
      %s43 = sphi 0, %s41
      %s44 = sphi 0, %s42
      %s54 = sphi 0, %s56
      %s57 = sphi 0, %s54
      %s58 = sphi 0, %s57
      %s74 = sphi 0, %s58
      %s78 = sphi 0, %s78
      %s80 = sphi 0, %s78
      %s81 = sphi 0, %s80
      %s95 = sphi 0, %s81
      %s101 = sphi 0, %s103
      %s104 = sphi 0, %s101
      %s105 = sphi 0, %s104
      %s121 = sphi 0, %s105
      %s127 = sphi 0, %s129
      %s130 = sphi 0, %s127
      %s131 = sphi 0, %s130
      %s147 = sphi 0, %s131
      %s153 = sphi 0, %s155
      %s156 = sphi 0, %s153
      %s157 = sphi 0, %s156
      %s173 = sphi 0, %s157
      %s179 = sphi 0, %s181
      %s182 = sphi 0, %s179
      %s183 = sphi 0, %s182
      %s199 = sphi 0, %s183
      %s205 = sphi 0, %s207
      %s208 = sphi 0, %s205
      %s209 = sphi 0, %s208
      %s225 = sphi 0, %s209
      %s231 = sphi 0, %s233
      %s234 = sphi 0, %s231
      %s235 = sphi 0, %s234
      %s251 = sphi 0, %s235
      %s257 = sphi 0, %s259
      %s260 = sphi 0, %s257
      %s261 = sphi 0, %s260
      %s277 = sphi 0, %s261
      %s283 = sphi 0, %s285
      %s286 = sphi 0, %s283
      %s287 = sphi 0, %s286
      %s303 = sphi 0, %s287
      %s309 = sphi 0, %s311
      %s312 = sphi 0, %s309
      %s313 = sphi 0, %s312
      %s329 = sphi 0, %s313
      %s335 = sphi 0, %s337
      %s338 = sphi 0, %s335
      %s339 = sphi 0, %s338
      %s355 = sphi 0, %s339
      %s361 = sphi 0, %s363
      %s364 = sphi 0, %s361
      %s365 = sphi 0, %s364
      %s381 = sphi 0, %s365
      %s387 = sphi 0, %s389
      %s390 = sphi 0, %s387
      %s391 = sphi 0, %s390
      %s407 = sphi 0, %s391
      %s413 = sphi 0, %s415
      %s416 = sphi 0, %s413
      %s417 = sphi 0, %s416
      %s433 = sphi 0, %s417
      %s441 = sphi 0, %s443
      %s444 = sphi 0, %s441
      %s445 = sphi 0, %s444
      %s461 = sphi 0, %s445
    $region4: #{tpu_custom_call.1} parent=1 // loop_header_branch
      %35 = sbr.rel (%p33) target = $region8
    $region5: #{tpu_custom_call.1} parent=1 // loop_body
      %s37 = ssub.s32 %s32, 1
      %s38 = ssub.s32 %s32, 2
      %s45 = sadd.s32 1, %s40
      %p46 = scmp.ge.s32.totalorder %s45, 2
      %s47 = scalar_select %p46, 0, %s45
      %s48 = sadd.s32 1, %s39
      %s49 = scalar_select %p46, %s48, %s39
      %p50 = scmp.ge.s32.totalorder %s49, 2
      %s51 = scalar_select %p50, 0, %s49
      %s52 = ssub.s32 %s39, %s51
      %p53 = scmp.eq.s32.totalorder %s52, 0
      %s55 = sadd.s32 %s54, 1
      %s56 = scalar_select %p53, %s54, %s55
      %p59 = pneg %p53
      %p60 = scmp.eq.s32.totalorder %s32, 3
      %p61 = por %p59, %p60
      %p62 = scmp.ne.s32.totalorder %s54, %s57
      %p63 = scmp.eq.s32.totalorder %s32, 0
      %p64 = por %p62, %p63
      %p65 = scmp.ne.s32.totalorder %s54, %s57
      %p66 = scmp.eq.s32.totalorder %s37, 3
      %p67 = por %p65, %p66
      %p68 = scmp.ne.s32.totalorder %s57, %s58
      %p69 = scmp.eq.s32.totalorder %s37, 0
      %p70 = por %p68, %p69
      %p71 = scmp.ne.s32.totalorder %s57, %s58
      %p72 = scmp.eq.s32.totalorder %s38, 3
      %p73 = por %p71, %p72
      %p75 = scmp.ne.s32.totalorder %s58, %s74
      %p76 = scmp.eq.s32.totalorder %s38, 0
      %p77 = por %p75, %p76
      %s79 = sadd.s32 %s78, 1
      %p82 = scmp.eq.s32.totalorder %s32, 3
      %p83 = scmp.ne.s32.totalorder %s78, %s80
      %p84 = scmp.eq.s32.totalorder %s32, 0
      %p85 = por %p83, %p84
      %p86 = scmp.ne.s32.totalorder %s78, %s80
      %p87 = scmp.eq.s32.totalorder %s37, 3
      %p88 = por %p86, %p87
      %p89 = scmp.ne.s32.totalorder %s80, %s81
      %p90 = scmp.eq.s32.totalorder %s37, 0
      %p91 = por %p89, %p90
      %p92 = scmp.ne.s32.totalorder %s80, %s81
      %p93 = scmp.eq.s32.totalorder %s38, 3
      %p94 = por %p92, %p93
      %p96 = scmp.ne.s32.totalorder %s81, %s95
      %p97 = scmp.eq.s32.totalorder %s38, 0
      %p98 = por %p96, %p97
      %s99 = ssub.s32 %s40, %s47
      %p100 = scmp.eq.s32.totalorder %s99, 0
      %s102 = sadd.s32 %s101, 1
      %s103 = scalar_select %p100, %s101, %s102
      %p106 = pneg %p100
      %p107 = scmp.eq.s32.totalorder %s32, 3
      %p108 = por %p106, %p107
      %p109 = scmp.ne.s32.totalorder %s101, %s104
      %p110 = scmp.eq.s32.totalorder %s32, 0
      %p111 = por %p109, %p110
      %p112 = scmp.ne.s32.totalorder %s101, %s104
      %p113 = scmp.eq.s32.totalorder %s37, 3
      %p114 = por %p112, %p113
      %p115 = scmp.ne.s32.totalorder %s104, %s105
      %p116 = scmp.eq.s32.totalorder %s37, 0
      %p117 = por %p115, %p116
      %p118 = scmp.ne.s32.totalorder %s104, %s105
      %p119 = scmp.eq.s32.totalorder %s38, 3
      %p120 = por %p118, %p119
      %p122 = scmp.ne.s32.totalorder %s105, %s121
      %p123 = scmp.eq.s32.totalorder %s38, 0
      %p124 = por %p122, %p123
      %s125 = ssub.s32 %s40, %s47
      %p126 = scmp.eq.s32.totalorder %s125, 0
      %s128 = sadd.s32 %s127, 1
      %s129 = scalar_select %p126, %s127, %s128
      %p132 = pneg %p126
      %p133 = scmp.eq.s32.totalorder %s32, 3
      %p134 = por %p132, %p133
      %p135 = scmp.ne.s32.totalorder %s127, %s130
      %p136 = scmp.eq.s32.totalorder %s32, 0
      %p137 = por %p135, %p136
      %p138 = scmp.ne.s32.totalorder %s127, %s130
      %p139 = scmp.eq.s32.totalorder %s37, 3
      %p140 = por %p138, %p139
      %p141 = scmp.ne.s32.totalorder %s130, %s131
      %p142 = scmp.eq.s32.totalorder %s37, 0
      %p143 = por %p141, %p142
      %p144 = scmp.ne.s32.totalorder %s130, %s131
      %p145 = scmp.eq.s32.totalorder %s38, 3
      %p146 = por %p144, %p145
      %p148 = scmp.ne.s32.totalorder %s131, %s147
      %p149 = scmp.eq.s32.totalorder %s38, 0
      %p150 = por %p148, %p149
      %s151 = ssub.s32 %s40, %s47
      %p152 = scmp.eq.s32.totalorder %s151, 0
      %s154 = sadd.s32 %s153, 1
      %s155 = scalar_select %p152, %s153, %s154
      %p158 = pneg %p152
      %p159 = scmp.eq.s32.totalorder %s32, 3
      %p160 = por %p158, %p159
      %p161 = scmp.ne.s32.totalorder %s153, %s156
      %p162 = scmp.eq.s32.totalorder %s32, 0
      %p163 = por %p161, %p162
      %p164 = scmp.ne.s32.totalorder %s153, %s156
      %p165 = scmp.eq.s32.totalorder %s37, 3
      %p166 = por %p164, %p165
      %p167 = scmp.ne.s32.totalorder %s156, %s157
      %p168 = scmp.eq.s32.totalorder %s37, 0
      %p169 = por %p167, %p168
      %p170 = scmp.ne.s32.totalorder %s156, %s157
      %p171 = scmp.eq.s32.totalorder %s38, 3
      %p172 = por %p170, %p171
      %p174 = scmp.ne.s32.totalorder %s157, %s173
      %p175 = scmp.eq.s32.totalorder %s38, 0
      %p176 = por %p174, %p175
      %s177 = ssub.s32 %s40, %s47
      %p178 = scmp.eq.s32.totalorder %s177, 0
      %s180 = sadd.s32 %s179, 1
      %s181 = scalar_select %p178, %s179, %s180
      %p184 = pneg %p178
      %p185 = scmp.eq.s32.totalorder %s32, 3
      %p186 = por %p184, %p185
      %p187 = scmp.ne.s32.totalorder %s179, %s182
      %p188 = scmp.eq.s32.totalorder %s32, 0
      %p189 = por %p187, %p188
      %p190 = scmp.ne.s32.totalorder %s179, %s182
      %p191 = scmp.eq.s32.totalorder %s37, 3
      %p192 = por %p190, %p191
      %p193 = scmp.ne.s32.totalorder %s182, %s183
      %p194 = scmp.eq.s32.totalorder %s37, 0
      %p195 = por %p193, %p194
      %p196 = scmp.ne.s32.totalorder %s182, %s183
      %p197 = scmp.eq.s32.totalorder %s38, 3
      %p198 = por %p196, %p197
      %p200 = scmp.ne.s32.totalorder %s183, %s199
      %p201 = scmp.eq.s32.totalorder %s38, 0
      %p202 = por %p200, %p201
      %s203 = ssub.s32 %s40, %s47
      %p204 = scmp.eq.s32.totalorder %s203, 0
      %s206 = sadd.s32 %s205, 1
      %s207 = scalar_select %p204, %s205, %s206
      %p210 = pneg %p204
      %p211 = scmp.eq.s32.totalorder %s32, 3
      %p212 = por %p210, %p211
      %p213 = scmp.ne.s32.totalorder %s205, %s208
      %p214 = scmp.eq.s32.totalorder %s32, 0
      %p215 = por %p213, %p214
      %p216 = scmp.ne.s32.totalorder %s205, %s208
      %p217 = scmp.eq.s32.totalorder %s37, 3
      %p218 = por %p216, %p217
      %p219 = scmp.ne.s32.totalorder %s208, %s209
      %p220 = scmp.eq.s32.totalorder %s37, 0
      %p221 = por %p219, %p220
      %p222 = scmp.ne.s32.totalorder %s208, %s209
      %p223 = scmp.eq.s32.totalorder %s38, 3
      %p224 = por %p222, %p223
      %p226 = scmp.ne.s32.totalorder %s209, %s225
      %p227 = scmp.eq.s32.totalorder %s38, 0
      %p228 = por %p226, %p227
      %s229 = ssub.s32 %s40, %s47
      %p230 = scmp.eq.s32.totalorder %s229, 0
      %s232 = sadd.s32 %s231, 1
      %s233 = scalar_select %p230, %s231, %s232
      %p236 = pneg %p230
      %p237 = scmp.eq.s32.totalorder %s32, 3
      %p238 = por %p236, %p237
      %p239 = scmp.ne.s32.totalorder %s231, %s234
      %p240 = scmp.eq.s32.totalorder %s32, 0
      %p241 = por %p239, %p240
      %p242 = scmp.ne.s32.totalorder %s231, %s234
      %p243 = scmp.eq.s32.totalorder %s37, 3
      %p244 = por %p242, %p243
      %p245 = scmp.ne.s32.totalorder %s234, %s235
      %p246 = scmp.eq.s32.totalorder %s37, 0
      %p247 = por %p245, %p246
      %p248 = scmp.ne.s32.totalorder %s234, %s235
      %p249 = scmp.eq.s32.totalorder %s38, 3
      %p250 = por %p248, %p249
      %p252 = scmp.ne.s32.totalorder %s235, %s251
      %p253 = scmp.eq.s32.totalorder %s38, 0
      %p254 = por %p252, %p253
      %s255 = ssub.s32 %s40, %s47
      %p256 = scmp.eq.s32.totalorder %s255, 0
      %s258 = sadd.s32 %s257, 1
      %s259 = scalar_select %p256, %s257, %s258
      %p262 = pneg %p256
      %p263 = scmp.eq.s32.totalorder %s32, 3
      %p264 = por %p262, %p263
      %p265 = scmp.ne.s32.totalorder %s257, %s260
      %p266 = scmp.eq.s32.totalorder %s32, 0
      %p267 = por %p265, %p266
      %p268 = scmp.ne.s32.totalorder %s257, %s260
      %p269 = scmp.eq.s32.totalorder %s37, 3
      %p270 = por %p268, %p269
      %p271 = scmp.ne.s32.totalorder %s260, %s261
      %p272 = scmp.eq.s32.totalorder %s37, 0
      %p273 = por %p271, %p272
      %p274 = scmp.ne.s32.totalorder %s260, %s261
      %p275 = scmp.eq.s32.totalorder %s38, 3
      %p276 = por %p274, %p275
      %p278 = scmp.ne.s32.totalorder %s261, %s277
      %p279 = scmp.eq.s32.totalorder %s38, 0
      %p280 = por %p278, %p279
      %s281 = ssub.s32 %s40, %s47
      %p282 = scmp.eq.s32.totalorder %s281, 0
      %s284 = sadd.s32 %s283, 1
      %s285 = scalar_select %p282, %s283, %s284
      %p288 = pneg %p282
      %p289 = scmp.eq.s32.totalorder %s32, 3
      %p290 = por %p288, %p289
      %p291 = scmp.ne.s32.totalorder %s283, %s286
      %p292 = scmp.eq.s32.totalorder %s32, 0
      %p293 = por %p291, %p292
      %p294 = scmp.ne.s32.totalorder %s283, %s286
      %p295 = scmp.eq.s32.totalorder %s37, 3
      %p296 = por %p294, %p295
      %p297 = scmp.ne.s32.totalorder %s286, %s287
      %p298 = scmp.eq.s32.totalorder %s37, 0
      %p299 = por %p297, %p298
      %p300 = scmp.ne.s32.totalorder %s286, %s287
      %p301 = scmp.eq.s32.totalorder %s38, 3
      %p302 = por %p300, %p301
      %p304 = scmp.ne.s32.totalorder %s287, %s303
      %p305 = scmp.eq.s32.totalorder %s38, 0
      %p306 = por %p304, %p305
      %s307 = ssub.s32 %s40, %s47
      %p308 = scmp.eq.s32.totalorder %s307, 0
      %s310 = sadd.s32 %s309, 1
      %s311 = scalar_select %p308, %s309, %s310
      %p314 = pneg %p308
      %p315 = scmp.eq.s32.totalorder %s32, 3
      %p316 = por %p314, %p315
      %p317 = scmp.ne.s32.totalorder %s309, %s312
      %p318 = scmp.eq.s32.totalorder %s32, 0
      %p319 = por %p317, %p318
      %p320 = scmp.ne.s32.totalorder %s309, %s312
      %p321 = scmp.eq.s32.totalorder %s37, 3
      %p322 = por %p320, %p321
      %p323 = scmp.ne.s32.totalorder %s312, %s313
      %p324 = scmp.eq.s32.totalorder %s37, 0
      %p325 = por %p323, %p324
      %p326 = scmp.ne.s32.totalorder %s312, %s313
      %p327 = scmp.eq.s32.totalorder %s38, 3
      %p328 = por %p326, %p327
      %p330 = scmp.ne.s32.totalorder %s313, %s329
      %p331 = scmp.eq.s32.totalorder %s38, 0
      %p332 = por %p330, %p331
      %s333 = ssub.s32 %s40, %s47
      %p334 = scmp.eq.s32.totalorder %s333, 0
      %s336 = sadd.s32 %s335, 1
      %s337 = scalar_select %p334, %s335, %s336
      %p340 = pneg %p334
      %p341 = scmp.eq.s32.totalorder %s32, 3
      %p342 = por %p340, %p341
      %p343 = scmp.ne.s32.totalorder %s335, %s338
      %p344 = scmp.eq.s32.totalorder %s32, 0
      %p345 = por %p343, %p344
      %p346 = scmp.ne.s32.totalorder %s335, %s338
      %p347 = scmp.eq.s32.totalorder %s37, 3
      %p348 = por %p346, %p347
      %p349 = scmp.ne.s32.totalorder %s338, %s339
      %p350 = scmp.eq.s32.totalorder %s37, 0
      %p351 = por %p349, %p350
      %p352 = scmp.ne.s32.totalorder %s338, %s339
      %p353 = scmp.eq.s32.totalorder %s38, 3
      %p354 = por %p352, %p353
      %p356 = scmp.ne.s32.totalorder %s339, %s355
      %p357 = scmp.eq.s32.totalorder %s38, 0
      %p358 = por %p356, %p357
      %s359 = ssub.s32 %s40, %s47
      %p360 = scmp.eq.s32.totalorder %s359, 0
      %s362 = sadd.s32 %s361, 1
      %s363 = scalar_select %p360, %s361, %s362
      %p366 = pneg %p360
      %p367 = scmp.eq.s32.totalorder %s32, 3
      %p368 = por %p366, %p367
      %p369 = scmp.ne.s32.totalorder %s361, %s364
      %p370 = scmp.eq.s32.totalorder %s32, 0
      %p371 = por %p369, %p370
      %p372 = scmp.ne.s32.totalorder %s361, %s364
      %p373 = scmp.eq.s32.totalorder %s37, 3
      %p374 = por %p372, %p373
      %p375 = scmp.ne.s32.totalorder %s364, %s365
      %p376 = scmp.eq.s32.totalorder %s37, 0
      %p377 = por %p375, %p376
      %p378 = scmp.ne.s32.totalorder %s364, %s365
      %p379 = scmp.eq.s32.totalorder %s38, 3
      %p380 = por %p378, %p379
      %p382 = scmp.ne.s32.totalorder %s365, %s381
      %p383 = scmp.eq.s32.totalorder %s38, 0
      %p384 = por %p382, %p383
      %s385 = ssub.s32 %s40, %s47
      %p386 = scmp.eq.s32.totalorder %s385, 0
      %s388 = sadd.s32 %s387, 1
      %s389 = scalar_select %p386, %s387, %s388
      %p392 = pneg %p386
      %p393 = scmp.eq.s32.totalorder %s32, 3
      %p394 = por %p392, %p393
      %p395 = scmp.ne.s32.totalorder %s387, %s390
      %p396 = scmp.eq.s32.totalorder %s32, 0
      %p397 = por %p395, %p396
      %p398 = scmp.ne.s32.totalorder %s387, %s390
      %p399 = scmp.eq.s32.totalorder %s37, 3
      %p400 = por %p398, %p399
      %p401 = scmp.ne.s32.totalorder %s390, %s391
      %p402 = scmp.eq.s32.totalorder %s37, 0
      %p403 = por %p401, %p402
      %p404 = scmp.ne.s32.totalorder %s390, %s391
      %p405 = scmp.eq.s32.totalorder %s38, 3
      %p406 = por %p404, %p405
      %p408 = scmp.ne.s32.totalorder %s391, %s407
      %p409 = scmp.eq.s32.totalorder %s38, 0
      %p410 = por %p408, %p409
      %s411 = ssub.s32 %s39, %s51
      %p412 = scmp.eq.s32.totalorder %s411, 0
      %s414 = sadd.s32 %s413, 1
      %s415 = scalar_select %p412, %s413, %s414
      %p418 = pneg %p412
      %p419 = scmp.eq.s32.totalorder %s32, 3
      %p420 = por %p418, %p419
      %p421 = scmp.ne.s32.totalorder %s413, %s416
      %p422 = scmp.eq.s32.totalorder %s32, 0
      %p423 = por %p421, %p422
      %p424 = scmp.ne.s32.totalorder %s413, %s416
      %p425 = scmp.eq.s32.totalorder %s37, 3
      %p426 = por %p424, %p425
      %p427 = scmp.ne.s32.totalorder %s416, %s417
      %p428 = scmp.eq.s32.totalorder %s37, 0
      %p429 = por %p427, %p428
      %p430 = scmp.ne.s32.totalorder %s416, %s417
      %p431 = scmp.eq.s32.totalorder %s38, 3
      %p432 = por %p430, %p431
      %p434 = scmp.ne.s32.totalorder %s417, %s433
      %p435 = scmp.eq.s32.totalorder %s38, 0
      %p436 = por %p434, %p435
      %s437 = ssub.s32 %s40, %s47
      %s438 = ssub.s32 %s39, %s51
      %s439 = sor.u32 %s437, %s438
      %p440 = scmp.eq.s32.totalorder %s439, 0
      %s442 = sadd.s32 %s441, 1
      %s443 = scalar_select %p440, %s441, %s442
      %p446 = pneg %p440
      %p447 = scmp.eq.s32.totalorder %s32, 3
      %p448 = por %p446, %p447
      %p449 = scmp.ne.s32.totalorder %s441, %s444
      %p450 = scmp.eq.s32.totalorder %s32, 0
      %p451 = por %p449, %p450
      %p452 = scmp.ne.s32.totalorder %s441, %s444
      %p453 = scmp.eq.s32.totalorder %s37, 3
      %p454 = por %p452, %p453
      %p455 = scmp.ne.s32.totalorder %s444, %s445
      %p456 = scmp.eq.s32.totalorder %s37, 0
      %p457 = por %p455, %p456
      %p458 = scmp.ne.s32.totalorder %s444, %s445
      %p459 = scmp.eq.s32.totalorder %s38, 3
      %p460 = por %p458, %p459
      %p462 = scmp.ne.s32.totalorder %s445, %s461
      %p463 = scmp.eq.s32.totalorder %s38, 0
      %p464 = por %p462, %p463
      %p465 = scmp.le.s32.totalorder 1, %s32
      %p466 = scmp.lt.s32.totalorder %s32, 5
      %p467 = pnand %p465, %p466
      %p468 = pneg %p467
      // Predicated region
      $region9: #{tpu_custom_call.1} parent=5 // pred_check
        _
      $region10: #{tpu_custom_call.1} parent=5 // pred_check_branch
        %470 = sbr.rel (%p467) target = $region12
      $region11: #{tpu_custom_call.1} parent=5 // pred_region
        %s471 = ssub.s32 %s32, 1
        // Predicated region
        $region13: #{tpu_custom_call.1} parent=11 // pred_check
          %p472 = pneg %p91
        $region14: #{tpu_custom_call.1} parent=11 // pred_check_branch
          %474 = sbr.rel (%p472) target = $region16
        $region15: #{tpu_custom_call.1} parent=11 // pred_region
          %s476 = ssub.s32 128, 128
          %477 = vsyncadd [#allocation7], %s476
          %s479 = sshll.u32 [#allocation6], 4
          %s480 = int_to_ptr.vmem [resolvable:$true] %s479
          %482 = dma.hbm_to_vmem [thread:$0]  %s1, 128, %s480, [#allocation7]
        $region16: #{tpu_custom_call.1} parent=11 // pred_fallthru
          _
      $region12: #{tpu_custom_call.1} parent=5 // pred_fallthru
        _
      %p483 = scmp.lt.s32.totalorder %s32, 4
      // Predicated region
      $region17: #{tpu_custom_call.1} parent=5 // pred_check
        %p484 = pneg %p483
      $region18: #{tpu_custom_call.1} parent=5 // pred_check_branch
        %486 = sbr.rel (%p484) target = $region20
      $region19: #{tpu_custom_call.1} parent=5 // pred_region
        // Predicated region
        $region21: #{tpu_custom_call.1} parent=19 // pred_check
          %p487 = pneg %p64
        $region22: #{tpu_custom_call.1} parent=19 // pred_check_branch
          %489 = sbr.rel (%p487) target = $region24
        $region23: #{tpu_custom_call.1} parent=19 // pred_region
          %s490 = sand.u32 %s32, 1
          %s491 = scalar_lea.sflag [#allocation4], %s490
          %s492 = sand.u32 %s54, 1
          %s493 = smul.addr %s492, 8
          %s494 = scalar_lea.vmem [#allocation3], %s493
          %s496 = ssub.s32 128, 128
          %497 = vsyncadd %s491, %s496
          %s498 = smul.addr %s39, 128
          %s499 = scalar_lea.hbm %s0, %s498
          %s501 = sshll.u32 %s494, 4
          %s502 = int_to_ptr.vmem [resolvable:$true] %s501
          %504 = dma.hbm_to_vmem [thread:$0]  %s499, 128, %s502, %s491
        $region24: #{tpu_custom_call.1} parent=19 // pred_fallthru
          _
        // Predicated region
        $region25: #{tpu_custom_call.1} parent=19 // pred_check
          %p505 = pneg %p111
        $region26: #{tpu_custom_call.1} parent=19 // pred_check_branch
          %507 = sbr.rel (%p505) target = $region28
        $region27: #{tpu_custom_call.1} parent=19 // pred_region
          %s508 = sand.u32 %s32, 1
          %s509 = scalar_lea.sflag [#allocation4], %s508
          %s510 = sand.u32 %s101, 1
          %s511 = smul.addr %s510, 48
          %s512 = scalar_lea.vmem [#allocation8], %s511
          %s514 = ssub.s32 768, 768
          %515 = vsyncadd %s509, %s514
          %s516 = smul.addr %s40, 12
          %s517 = smul.addr %s516, 64
          %s518 = scalar_lea.hbm %s2, %s517
          %s519 = sshll.u32 %s512, 4
          %s520 = int_to_ptr.vmem [resolvable:$true] %s519
          %525 = dma.hbm_to_vmem [thread:$0]  %s518, 768, %s520, %s509, 192, 192, 12
        $region28: #{tpu_custom_call.1} parent=19 // pred_fallthru
          _
        // Predicated region
        $region29: #{tpu_custom_call.1} parent=19 // pred_check
          %p526 = pneg %p137
        $region30: #{tpu_custom_call.1} parent=19 // pred_check_branch
          %528 = sbr.rel (%p526) target = $region32
        $region31: #{tpu_custom_call.1} parent=19 // pred_region
          %p529 = scmp.lt.s32.totalorder %s40, 1
          %s530 = scalar_select %p529, %s40, 1
          %s531 = smul.addr %s530, 3
          %s532 = scalar_lea.vmem %s3, %s531
        $region32: #{tpu_custom_call.1} parent=19 // pred_fallthru
          _
        // Predicated region
        $region33: #{tpu_custom_call.1} parent=19 // pred_check
          %p533 = pneg %p163
        $region34: #{tpu_custom_call.1} parent=19 // pred_check_branch
          %535 = sbr.rel (%p533) target = $region36
        $region35: #{tpu_custom_call.1} parent=19 // pred_region
          %p536 = scmp.lt.s32.totalorder %s40, 1
          %s537 = scalar_select %p536, %s40, 1
          %s538 = smul.addr %s537, 16
          %s539 = smul.addr %s538, 4
          %s540 = scalar_lea.vmem %s4, %s539
        $region36: #{tpu_custom_call.1} parent=19 // pred_fallthru
          _
        // Predicated region
        $region37: #{tpu_custom_call.1} parent=19 // pred_check
          %p541 = pneg %p189
        $region38: #{tpu_custom_call.1} parent=19 // pred_check_branch
          %543 = sbr.rel (%p541) target = $region40
        $region39: #{tpu_custom_call.1} parent=19 // pred_region
          %p544 = scmp.lt.s32.totalorder %s40, 1
          %s545 = scalar_select %p544, %s40, 1
          %s546 = scalar_lea.vmem %s5, %s545
        $region40: #{tpu_custom_call.1} parent=19 // pred_fallthru
          _
        // Predicated region
        $region41: #{tpu_custom_call.1} parent=19 // pred_check
          %p547 = pneg %p215
        $region42: #{tpu_custom_call.1} parent=19 // pred_check_branch
          %549 = sbr.rel (%p547) target = $region44
        $region43: #{tpu_custom_call.1} parent=19 // pred_region
          %p550 = scmp.lt.s32.totalorder %s40, 1
          %s551 = scalar_select %p550, %s40, 1
          %s552 = smul.addr %s551, 4
          %s553 = smul.addr %s552, 4
          %s554 = scalar_lea.vmem %s6, %s553
        $region44: #{tpu_custom_call.1} parent=19 // pred_fallthru
          _
        // Predicated region
        $region45: #{tpu_custom_call.1} parent=19 // pred_check
          %p555 = pneg %p241
        $region46: #{tpu_custom_call.1} parent=19 // pred_check_branch
          %557 = sbr.rel (%p555) target = $region48
        $region47: #{tpu_custom_call.1} parent=19 // pred_region
          %p558 = scmp.lt.s32.totalorder %s40, 1
          %s559 = scalar_select %p558, %s40, 1
          %s560 = scalar_lea.vmem %s7, %s559
        $region48: #{tpu_custom_call.1} parent=19 // pred_fallthru
          _
        // Predicated region
        $region49: #{tpu_custom_call.1} parent=19 // pred_check
          %p561 = pneg %p267
        $region50: #{tpu_custom_call.1} parent=19 // pred_check_branch
          %563 = sbr.rel (%p561) target = $region52
        $region51: #{tpu_custom_call.1} parent=19 // pred_region
          %p564 = scmp.lt.s32.totalorder %s40, 1
          %s565 = scalar_select %p564, %s40, 1
          %s566 = smul.addr %s565, 16
          %s567 = smul.addr %s566, 4
          %s568 = scalar_lea.vmem %s8, %s567
        $region52: #{tpu_custom_call.1} parent=19 // pred_fallthru
          _
        // Predicated region
        $region53: #{tpu_custom_call.1} parent=19 // pred_check
          %p569 = pneg %p293
        $region54: #{tpu_custom_call.1} parent=19 // pred_check_branch
          %571 = sbr.rel (%p569) target = $region56
        $region55: #{tpu_custom_call.1} parent=19 // pred_region
          %p572 = scmp.lt.s32.totalorder %s40, 1
          %s573 = scalar_select %p572, %s40, 1
          %s574 = scalar_lea.vmem %s9, %s573
        $region56: #{tpu_custom_call.1} parent=19 // pred_fallthru
          _
        // Predicated region
        $region57: #{tpu_custom_call.1} parent=19 // pred_check
          %p575 = pneg %p319
        $region58: #{tpu_custom_call.1} parent=19 // pred_check_branch
          %577 = sbr.rel (%p575) target = $region60
        $region59: #{tpu_custom_call.1} parent=19 // pred_region
          %p578 = scmp.lt.s32.totalorder %s40, 1
          %s579 = scalar_select %p578, %s40, 1
          %s580 = scalar_lea.vmem %s10, %s579
        $region60: #{tpu_custom_call.1} parent=19 // pred_fallthru
          _
        // Predicated region
        $region61: #{tpu_custom_call.1} parent=19 // pred_check
          %p581 = pneg %p345
        $region62: #{tpu_custom_call.1} parent=19 // pred_check_branch
          %583 = sbr.rel (%p581) target = $region64
        $region63: #{tpu_custom_call.1} parent=19 // pred_region
          %p584 = scmp.lt.s32.totalorder %s40, 1
          %s585 = scalar_select %p584, %s40, 1
          %s586 = scalar_lea.vmem %s11, %s585
        $region64: #{tpu_custom_call.1} parent=19 // pred_fallthru
          _
        // Predicated region
        $region65: #{tpu_custom_call.1} parent=19 // pred_check
          %p587 = pneg %p371
        $region66: #{tpu_custom_call.1} parent=19 // pred_check_branch
          %589 = sbr.rel (%p587) target = $region68
        $region67: #{tpu_custom_call.1} parent=19 // pred_region
          %p590 = scmp.lt.s32.totalorder %s40, 1
          %s591 = scalar_select %p590, %s40, 1
          %s592 = scalar_lea.vmem %s12, %s591
        $region68: #{tpu_custom_call.1} parent=19 // pred_fallthru
          _
        // Predicated region
        $region69: #{tpu_custom_call.1} parent=19 // pred_check
          %p593 = pneg %p397
        $region70: #{tpu_custom_call.1} parent=19 // pred_check_branch
          %595 = sbr.rel (%p593) target = $region72
        $region71: #{tpu_custom_call.1} parent=19 // pred_region
          %p596 = scmp.lt.s32.totalorder %s40, 1
          %s597 = scalar_select %p596, %s40, 1
          %s598 = scalar_lea.vmem %s13, %s597
        $region72: #{tpu_custom_call.1} parent=19 // pred_fallthru
          _
      $region20: #{tpu_custom_call.1} parent=5 // pred_fallthru
        _
      %p599 = scmp.le.s32.totalorder 1, %s32
      %p600 = scmp.lt.s32.totalorder %s32, 5
      %p601 = pnand %p599, %p600
      %p602 = pneg %p601
      // Predicated region
      $region73: #{tpu_custom_call.1} parent=5 // pred_check
        _
      $region74: #{tpu_custom_call.1} parent=5 // pred_check_branch
        %604 = sbr.rel (%p601) target = $region76
      $region75: #{tpu_custom_call.1} parent=5 // pred_region
        %s605 = ssub.s32 %s32, 1
        %s606 = sand.u32 %s37, 1
        %s607 = scalar_lea.sflag [#allocation4], %s606
        %s608 = sand.u32 %s57, 1
        %s609 = smul.addr %s608, 8
        %s610 = scalar_lea.vmem [#allocation3], %s609
        // Predicated region
        $region77: #{tpu_custom_call.1} parent=75 // pred_check
          %p611 = pneg %p70
        $region78: #{tpu_custom_call.1} parent=75 // pred_check_branch
          %613 = sbr.rel (%p611) target = $region80
        $region79: #{tpu_custom_call.1} parent=75 // pred_region
          %614 = dma.done %s607, 128
        $region80: #{tpu_custom_call.1} parent=75 // pred_fallthru
          _
        // Predicated region
        $region81: #{tpu_custom_call.1} parent=75 // pred_check
          %p615 = pneg %p91
        $region82: #{tpu_custom_call.1} parent=75 // pred_check_branch
          %617 = sbr.rel (%p615) target = $region84
        $region83: #{tpu_custom_call.1} parent=75 // pred_region
          %618 = dma.done [#allocation7], 128
        $region84: #{tpu_custom_call.1} parent=75 // pred_fallthru
          _
        %s619 = sand.u32 %s37, 1
        %s620 = scalar_lea.sflag [#allocation4], %s619
        %s621 = sand.u32 %s104, 1
        %s622 = smul.addr %s621, 48
        %s623 = scalar_lea.vmem [#allocation8], %s622
        // Predicated region
        $region85: #{tpu_custom_call.1} parent=75 // pred_check
          %p624 = pneg %p117
        $region86: #{tpu_custom_call.1} parent=75 // pred_check_branch
          %626 = sbr.rel (%p624) target = $region88
        $region87: #{tpu_custom_call.1} parent=75 // pred_region
          %627 = dma.done %s620, 768
        $region88: #{tpu_custom_call.1} parent=75 // pred_fallthru
          _
        %s628 = sand.u32 %s37, 1
        %s629 = scalar_lea.sflag [#allocation4], %s628
        %s630 = sand.u32 %s57, 1
        %s631 = smul.addr %s630, 8
        %s632 = scalar_lea.vmem [#allocation3], %s631
        %p633 = pneg %p70
        %p634 = pneg %p67
        %p635 = pneg %p91
        %p636 = pneg %p88
        %s637 = sand.u32 %s37, 1
        %s638 = scalar_lea.sflag [#allocation4], %s637
        %s639 = sand.u32 %s104, 1
        %s640 = smul.addr %s639, 48
        %s641 = scalar_lea.vmem [#allocation8], %s640
        %p642 = pneg %p117
        %p643 = pneg %p114
        %p644 = scmp.lt.s32.totalorder %s42, 1
        %s645 = scalar_select %p644, %s42, 1
        %s646 = smul.addr %s645, 3
        %s647 = scalar_lea.vmem %s3, %s646
        %p648 = pneg %p143
        %p649 = pneg %p140
        %p650 = scmp.lt.s32.totalorder %s42, 1
        %s651 = scalar_select %p650, %s42, 1
        %s652 = smul.addr %s651, 16
        %s653 = smul.addr %s652, 4
        %s654 = scalar_lea.vmem %s4, %s653
        %p655 = pneg %p169
        %p656 = pneg %p166
        %p657 = scmp.lt.s32.totalorder %s42, 1
        %s658 = scalar_select %p657, %s42, 1
        %s659 = scalar_lea.vmem %s5, %s658
        %p660 = pneg %p195
        %p661 = pneg %p192
        %p662 = scmp.lt.s32.totalorder %s42, 1
        %s663 = scalar_select %p662, %s42, 1
        %s664 = smul.addr %s663, 4
        %s665 = smul.addr %s664, 4
        %s666 = scalar_lea.vmem %s6, %s665
        %p667 = pneg %p221
        %p668 = pneg %p218
        %p669 = scmp.lt.s32.totalorder %s42, 1
        %s670 = scalar_select %p669, %s42, 1
        %s671 = scalar_lea.vmem %s7, %s670
        %p672 = pneg %p247
        %p673 = pneg %p244
        %p674 = scmp.lt.s32.totalorder %s42, 1
        %s675 = scalar_select %p674, %s42, 1
        %s676 = smul.addr %s675, 16
        %s677 = smul.addr %s676, 4
        %s678 = scalar_lea.vmem %s8, %s677
        %p679 = pneg %p273
        %p680 = pneg %p270
        %p681 = scmp.lt.s32.totalorder %s42, 1
        %s682 = scalar_select %p681, %s42, 1
        %s683 = scalar_lea.vmem %s9, %s682
        %p684 = pneg %p299
        %p685 = pneg %p296
        %p686 = scmp.lt.s32.totalorder %s42, 1
        %s687 = scalar_select %p686, %s42, 1
        %s688 = scalar_lea.vmem %s10, %s687
        %p689 = pneg %p325
        %p690 = pneg %p322
        %p691 = scmp.lt.s32.totalorder %s42, 1
        %s692 = scalar_select %p691, %s42, 1
        %s693 = scalar_lea.vmem %s11, %s692
        %p694 = pneg %p351
        %p695 = pneg %p348
        %p696 = scmp.lt.s32.totalorder %s42, 1
        %s697 = scalar_select %p696, %s42, 1
        %s698 = scalar_lea.vmem %s12, %s697
        %p699 = pneg %p377
        %p700 = pneg %p374
        %p701 = scmp.lt.s32.totalorder %s42, 1
        %s702 = scalar_select %p701, %s42, 1
        %s703 = scalar_lea.vmem %s13, %s702
        %p704 = pneg %p403
        %p705 = pneg %p400
        %p706 = pneg %p429
        %p707 = pneg %p426
        %s708 = sand.u32 %s416, 1
        %s709 = scalar_lea.sflag [#allocation5], %s708
        %s710 = sand.u32 %s416, 1
        %s711 = smul.addr %s710, 8
        %s712 = scalar_lea.vmem [#allocation9], %s711
        %p713 = pneg %p457
        %p714 = pneg %p454
        %s715 = sand.u32 %s444, 1
        %s716 = scalar_lea.sflag [#allocation11], %s715
        %s717 = sand.u32 %s444, 1
        %s718 = smul.addr %s717, 16
        %s719 = scalar_lea.vmem [#allocation10], %s718
        %p720 = scmp.lt.s32.totalorder %s42, 1
        %s721 = scalar_select %p720, %s42, 1
        %s722 = smul.addr %s721, 3
        %s723 = scalar_lea.vmem %s3, %s722
        %p724 = scmp.lt.s32.totalorder %s42, 1
        %s725 = scalar_select %p724, %s42, 1
        %s726 = smul.addr %s725, 16
        %s727 = smul.addr %s726, 4
        %s728 = scalar_lea.vmem %s4, %s727
        %p729 = scmp.lt.s32.totalorder %s42, 1
        %s730 = scalar_select %p729, %s42, 1
        %s731 = scalar_lea.vmem %s5, %s730
        %p732 = scmp.lt.s32.totalorder %s42, 1
        %s733 = scalar_select %p732, %s42, 1
        %s734 = smul.addr %s733, 4
        %s735 = smul.addr %s734, 4
        %s736 = scalar_lea.vmem %s6, %s735
        %p737 = scmp.lt.s32.totalorder %s42, 1
        %s738 = scalar_select %p737, %s42, 1
        %s739 = scalar_lea.vmem %s7, %s738
        %p740 = scmp.lt.s32.totalorder %s42, 1
        %s741 = scalar_select %p740, %s42, 1
        %s742 = smul.addr %s741, 16
        %s743 = smul.addr %s742, 4
        %s744 = scalar_lea.vmem %s8, %s743
        %p745 = scmp.lt.s32.totalorder %s42, 1
        %s746 = scalar_select %p745, %s42, 1
        %s747 = scalar_lea.vmem %s9, %s746
        %p748 = scmp.lt.s32.totalorder %s42, 1
        %s749 = scalar_select %p748, %s42, 1
        %s750 = scalar_lea.vmem %s10, %s749
        %p751 = scmp.lt.s32.totalorder %s42, 1
        %s752 = scalar_select %p751, %s42, 1
        %s753 = scalar_lea.vmem %s11, %s752
        %p754 = scmp.lt.s32.totalorder %s42, 1
        %s755 = scalar_select %p754, %s42, 1
        %s756 = scalar_lea.vmem %s12, %s755
        %p757 = scmp.lt.s32.totalorder %s42, 1
        %s758 = scalar_select %p757, %s42, 1
        %s759 = scalar_lea.vmem %s13, %s758
        %p761 = scmp.eq.s32.totalorder %s42, 0
        // Predicated region
        $region89: #{tpu_custom_call.1} parent=75 // pred_check
          %p762 = pneg %p761
        $region90: #{tpu_custom_call.1} parent=75 // pred_check_branch
          %764 = sbr.rel (%p762) target = $region92
        $region91: #{tpu_custom_call.1} parent=75 // pred_region
          %v765 = vld [vmem:[%s610] sm:$0xff]
          %vm766 = vcmask 261120
          %767 = vst.msk [vmem:[#allocation2] sm:$0xff] %vm766, %v765
        $region92: #{tpu_custom_call.1} parent=75 // pred_fallthru
          _
        %v768 = vld [vmem:[#allocation2] sm:$0xff]
        %v769 = vpack.c.bf16 %v768, %v768
        %v770 = vld [vmem:[%s623] sm:$0xff]
        %v771 = vld [vmem:[%s623 + $0x8] sm:$0xf]
        %v772 = vld [vmem:[%s623 + $0xc] sm:$0xff]
        %v773 = vld [vmem:[%s623 + $0x14] sm:$0xf]
        %v774 = vld [vmem:[%s623 + $0x18] sm:$0xff]
        %v775 = vld [vmem:[%s623 + $0x20] sm:$0xf]
        %v776 = vld [vmem:[%s623 + $0x24] sm:$0xff]
        %v777 = vld [vmem:[%s623 + $0x2c] sm:$0xf]
        %v778 = vld [vmem:[%s723] sm:$0x7]
        %v780 = vlaneseq
        %v781 = vshrl.u32 %v780, 7
        %v782 = vsub.s32 0, %v781
        %v783 = vrot.slane %v778, %v782
        %v784 = vlaneseq
        %v785 = vshrl.u32 %v784, 7
        %v786 = vsub.s32 1, %v785
        %v787 = vrot.slane %v778, %v786
        %v788 = vlaneseq
        %v789 = vshrl.u32 %v788, 7
        %v790 = vsub.s32 2, %v789
        %v791 = vrot.slane %v778, %v790
        %v803 = vunpack.c.l.b16 %v770
        %v804 = vunpack.c.h.b16 %v770
        %v805 = vunpack.c.l.b16 %v771
        %v806 = vunpack.c.l.b16 %v772
        %v807 = vunpack.c.h.b16 %v772
        %v808 = vunpack.c.l.b16 %v773
        %v809 = vunpack.c.l.b16 %v774
        %v810 = vunpack.c.h.b16 %v774
        %v811 = vunpack.c.l.b16 %v775
        %v812 = vunpack.c.l.b16 %v776
        %v813 = vunpack.c.h.b16 %v776
        %v814 = vunpack.c.l.b16 %v777
        %v815 = vpack.c.b16 %v806, %v803
        %v816 = vpack.c.b16 %v807, %v804
        %v817 = vpack.c.b16 %v808, %v805
        %v818 = vpack.c.b16 %v812, %v809
        %v819 = vpack.c.b16 %v813, %v810
        %v820 = vpack.c.b16 %v814, %v811
        %vm827 = vcmask 261120
        %v829 = vsel %vm827, %v769, 0
        %831 = vmatprep.subr.bf16.mxu0 0
        %832 = vmatpush1.bf16.msra.mxu0 0
        %833 = vmatprep.subr.bf16.mxu0 0
        %834 = vmatpush1.bf16.msra.mxu0 0
        %835 = vmatprep.subr.bf16.mxu0 0
        %836 = vmatpush1.bf16.msra.mxu0 0
        %837 = vmatprep.subr.bf16.mxu0 0
        %838 = vmatpush1.bf16.msra.mxu0 0
        %839 = vmatprep.subr.bf16.mxu0 0
        %840 = vmatpush1.bf16.msra.mxu0 0
        %841 = vmatprep.subr.bf16.mxu0 0
        %842 = vmatpush1.bf16.msra.mxu0 0
        %843 = vmatprep.subr.bf16.mxu0 %v819
        %844 = vmatpush1.bf16.msra.mxu0 %v818
        %845 = vmatprep.subr.bf16.mxu0 %v816
        %846 = vmatpush1.bf16.msra.mxu0 %v815
        %847 = vmatprep.subr.bf16.mxu0 0
        %848 = vmatpush2.bf16.msra.mxu0 0
        %849 = vmatprep.subr.bf16.mxu0 0
        %850 = vmatpush2.bf16.msra.mxu0 0
        %851 = vmatprep.subr.bf16.mxu0 0
        %852 = vmatpush2.bf16.msra.mxu0 0
        %853 = vmatprep.subr.bf16.mxu0 0
        %854 = vmatpush2.bf16.msra.mxu0 0
        %855 = vmatprep.subr.bf16.mxu0 0
        %856 = vmatpush2.bf16.msra.mxu0 0
        %857 = vmatprep.subr.bf16.mxu0 0
        %858 = vmatpush2.bf16.msra.mxu0 0
        %859 = vmatprep.subr.bf16.mxu0 0
        %860 = vmatpush2.bf16.msra.mxu0 0
        %861 = vmatprep.subr.bf16.mxu0 0
        %862 = vmatpush2.bf16.msra.mxu0 0
        %863 = vmatprep.mubr.bf16.mxu0 0
        %864 = vmatmul.mubr.bf16.gmra.mxu0 %v829
        %v865 = vpop.f32.mrf.mxu0
        %v866 = vadd.f32 %v783, %v865
        %v867 = vpop.f32.mrf.mxu0
        %v868 = vadd.f32 %v787, %v867
        %v869 = vpop.f32.mrf.mxu0
        %v870 = vpop.f32.mrf.mxu0
        %871 = vdwg.mxu0
        %872 = vmatprep.subr.bf16.mxu0 0
        %873 = vmatpush1.bf16.msra.mxu0 0
        %874 = vmatprep.subr.bf16.mxu0 0
        %875 = vmatpush1.bf16.msra.mxu0 0
        %876 = vmatprep.subr.bf16.mxu0 0
        %877 = vmatpush1.bf16.msra.mxu0 0
        %878 = vmatprep.subr.bf16.mxu0 0
        %879 = vmatpush1.bf16.msra.mxu0 0
        %880 = vmatprep.subr.bf16.mxu0 0
        %881 = vmatpush1.bf16.msra.mxu0 0
        %882 = vmatprep.subr.bf16.mxu0 0
        %883 = vmatpush1.bf16.msra.mxu0 0
        %884 = vmatprep.subr.bf16.mxu0 0
        %885 = vmatpush1.bf16.msra.mxu0 %v820
        %886 = vmatprep.subr.bf16.mxu0 0
        %887 = vmatpush1.bf16.msra.mxu0 %v817
        %888 = vmatprep.subr.bf16.mxu0 0
        %889 = vmatpush2.bf16.msra.mxu0 0
        %890 = vmatprep.subr.bf16.mxu0 0
        %891 = vmatpush2.bf16.msra.mxu0 0
        %892 = vmatprep.subr.bf16.mxu0 0
        %893 = vmatpush2.bf16.msra.mxu0 0
        %894 = vmatprep.subr.bf16.mxu0 0
        %895 = vmatpush2.bf16.msra.mxu0 0
        %896 = vmatprep.subr.bf16.mxu0 0
        %897 = vmatpush2.bf16.msra.mxu0 0
        %898 = vmatprep.subr.bf16.mxu0 0
        %899 = vmatpush2.bf16.msra.mxu0 0
        %900 = vmatprep.subr.bf16.mxu0 0
        %901 = vmatpush2.bf16.msra.mxu0 0
        %902 = vmatprep.subr.bf16.mxu0 0
        %903 = vmatpush2.bf16.msra.mxu0 0
        %904 = vmatprep.mubr.bf16.mxu0 0
        %905 = vmatmul.mubr.bf16.gmra.mxu0 %v829
        %v906 = vpop.f32.mrf.mxu0
        %v907 = vadd.f32 %v791, %v906
        %v908 = vpop.f32.mrf.mxu0
        %v909 = vpop.f32.mrf.mxu0
        %v910 = vpop.f32.mrf.mxu0
        %911 = vdwg.mxu0
        %v912 = vpack.c.bf16 %v866, %v866
        %v913 = vpack.c.bf16 %v868, %v868
        %v914 = vpack.c.bf16 %v907, %v907
        %v915 = vld [vmem:[#allocation6] sm:$0xff]
        %v917 = vsel %vm827, %v912, 0
        %v920 = vsel %vm827, %v913, 0
        %922 = vmatprep.subr.bf16.mxu0 0
        %923 = vmatpush1.bf16.xpose.msra.mxu0 0
        %924 = vmatprep.subr.bf16.mxu0 0
        %925 = vmatpush1.bf16.xpose.msra.mxu0 0
        %926 = vmatprep.subr.bf16.mxu0 0
        %927 = vmatpush1.bf16.xpose.msra.mxu0 0
        %928 = vmatprep.subr.bf16.mxu0 0
        %929 = vmatpush1.bf16.xpose.msra.mxu0 0
        %930 = vmatprep.subr.bf16.mxu0 0
        %931 = vmatpush1.bf16.xpose.msra.mxu0 0
        %932 = vmatprep.subr.bf16.mxu0 0
        %933 = vmatpush1.bf16.xpose.msra.mxu0 0
        %934 = vmatprep.subr.bf16.mxu0 0
        %935 = vmatpush1.bf16.xpose.msra.mxu0 0
        %936 = vmatprep.subr.bf16.mxu0 0
        %937 = vmatpush1.bf16.xpose.msra.mxu0 %v920
        %938 = vmatprep.subr.bf16.mxu0 0
        %939 = vmatpush2.bf16.xpose.msra.mxu0 0
        %940 = vmatprep.subr.bf16.mxu0 0
        %941 = vmatpush2.bf16.xpose.msra.mxu0 0
        %942 = vmatprep.subr.bf16.mxu0 0
        %943 = vmatpush2.bf16.xpose.msra.mxu0 0
        %944 = vmatprep.subr.bf16.mxu0 0
        %945 = vmatpush2.bf16.xpose.msra.mxu0 0
        %946 = vmatprep.subr.bf16.mxu0 0
        %947 = vmatpush2.bf16.xpose.msra.mxu0 0
        %948 = vmatprep.subr.bf16.mxu0 0
        %949 = vmatpush2.bf16.xpose.msra.mxu0 0
        %950 = vmatprep.subr.bf16.mxu0 0
        %951 = vmatpush2.bf16.xpose.msra.mxu0 0
        %952 = vmatprep.subr.bf16.mxu0 0
        %953 = vmatpush2.bf16.xpose.msra.mxu0 0
        %954 = vmatprep.mubr.bf16.mxu0 0
        %955 = vmatmul.mubr.bf16.gmra.mxu0 %v917
        %v956 = vpop.f32.mrf.mxu0
        %v957 = vadd.f32 %v915, %v956
        %v958 = vpop.f32.mrf.mxu0
        %v959 = vpop.f32.mrf.mxu0
        %v960 = vpop.f32.mrf.mxu0
        %961 = vdwg.mxu0
        %vm962 = vcmask 64512
        %v963 = vsel %vm962, %v957, -inf
        %964 = vmax.xlane.f32.xlu0 %v963
        %v965 = vpop.xlane.xlu0 %964
        %v966 = vsub.f32 %v957, %v965
        %v967 = vmul.f32 %v966, 1.442695
        %v968 = vpow.pop %v967
        %v969 = vsel %vm962, %v968, 0.0
        %970 = vadd.xlane.f32.xlu0 %v969
        %v971 = vpop.xlane.xlu0 %970
        %v972 = vrcp.pop %v971
        %v973 = vmul.f32 1.0, %v972
        %v974 = vmul.f32 %v968, %v973
        %v975 = vpack.c.bf16 %v974, %v974
        %vm976 = vcmask 60416
        %977 = vst.msk [vmem:[%s719] sm:$0xf] %vm976, %v975
        %v979 = vsel %vm962, %v975, 0
        %vm981 = vcmask 1043456
        %v983 = vsel %vm981, %v914, 0
        %985 = vmatprep.subr.bf16.mxu0 0
        %986 = vmatpush1.bf16.msra.mxu0 0
        %987 = vmatprep.subr.bf16.mxu0 0
        %988 = vmatpush1.bf16.msra.mxu0 0
        %989 = vmatprep.subr.bf16.mxu0 0
        %990 = vmatpush1.bf16.msra.mxu0 0
        %991 = vmatprep.subr.bf16.mxu0 0
        %992 = vmatpush1.bf16.msra.mxu0 0
        %993 = vmatprep.subr.bf16.mxu0 0
        %994 = vmatpush1.bf16.msra.mxu0 0
        %995 = vmatprep.subr.bf16.mxu0 0
        %996 = vmatpush1.bf16.msra.mxu0 0
        %997 = vmatprep.subr.bf16.mxu0 0
        %998 = vmatpush1.bf16.msra.mxu0 0
        %999 = vmatprep.subr.bf16.mxu0 0
        %1000 = vmatpush1.bf16.msra.mxu0 %v983
        %1001 = vmatprep.subr.bf16.mxu0 0
        %1002 = vmatpush2.bf16.msra.mxu0 0
        %1003 = vmatprep.subr.bf16.mxu0 0
        %1004 = vmatpush2.bf16.msra.mxu0 0
        %1005 = vmatprep.subr.bf16.mxu0 0
        %1006 = vmatpush2.bf16.msra.mxu0 0
        %1007 = vmatprep.subr.bf16.mxu0 0
        %1008 = vmatpush2.bf16.msra.mxu0 0
        %1009 = vmatprep.subr.bf16.mxu0 0
        %1010 = vmatpush2.bf16.msra.mxu0 0
        %1011 = vmatprep.subr.bf16.mxu0 0
        %1012 = vmatpush2.bf16.msra.mxu0 0
        %1013 = vmatprep.subr.bf16.mxu0 0
        %1014 = vmatpush2.bf16.msra.mxu0 0
        %1015 = vmatprep.subr.bf16.mxu0 0
        %1016 = vmatpush2.bf16.msra.mxu0 0
        %1017 = vmatprep.mubr.bf16.mxu0 0
        %1018 = vmatmul.mubr.bf16.gmra.mxu0 %v979
        %v1019 = vpop.f32.mrf.mxu0
        %v1020 = vadd.f32 0.0, %v1019
        %v1021 = vpop.f32.mrf.mxu0
        %v1022 = vpop.f32.mrf.mxu0
        %v1023 = vpop.f32.mrf.mxu0
        %1024 = vdwg.mxu0
        %v1025 = vpack.c.bf16 %v1020, %v1020
        %v1026 = vld [vmem:[%s728] sm:$0xf]
        %v1027 = vld [vmem:[%s728 + $0x4] sm:$0xf]
        %v1028 = vld [vmem:[%s728 + $0x8] sm:$0xf]
        %v1029 = vld [vmem:[%s728 + $0xc] sm:$0xf]
        %1031 = vrot.lane.b32.xlu0 %v912, 96
        %v1032 = vpop.permute.xlu0 %1031
        %1034 = vrot.lane.b32.xlu0 %v913, 96
        %v1035 = vpop.permute.xlu0 %1034
        %v1037 = vsel %vm827, %v1032, 0
        %v1040 = vsel %vm827, %v1035, 0
        %1042 = vmatprep.subr.bf16.mxu0 0
        %1043 = vmatpush1.bf16.xpose.msra.mxu0 0
        %1044 = vmatprep.subr.bf16.mxu0 0
        %1045 = vmatpush1.bf16.xpose.msra.mxu0 0
        %1046 = vmatprep.subr.bf16.mxu0 0
        %1047 = vmatpush1.bf16.xpose.msra.mxu0 0
        %1048 = vmatprep.subr.bf16.mxu0 0
        %1049 = vmatpush1.bf16.xpose.msra.mxu0 0
        %1050 = vmatprep.subr.bf16.mxu0 0
        %1051 = vmatpush1.bf16.xpose.msra.mxu0 0
        %1052 = vmatprep.subr.bf16.mxu0 0
        %1053 = vmatpush1.bf16.xpose.msra.mxu0 0
        %1054 = vmatprep.subr.bf16.mxu0 0
        %1055 = vmatpush1.bf16.xpose.msra.mxu0 0
        %1056 = vmatprep.subr.bf16.mxu0 0
        %1057 = vmatpush1.bf16.xpose.msra.mxu0 %v1040
        %1058 = vmatprep.subr.bf16.mxu0 0
        %1059 = vmatpush2.bf16.xpose.msra.mxu0 0
        %1060 = vmatprep.subr.bf16.mxu0 0
        %1061 = vmatpush2.bf16.xpose.msra.mxu0 0
        %1062 = vmatprep.subr.bf16.mxu0 0
        %1063 = vmatpush2.bf16.xpose.msra.mxu0 0
        %1064 = vmatprep.subr.bf16.mxu0 0
        %1065 = vmatpush2.bf16.xpose.msra.mxu0 0
        %1066 = vmatprep.subr.bf16.mxu0 0
        %1067 = vmatpush2.bf16.xpose.msra.mxu0 0
        %1068 = vmatprep.subr.bf16.mxu0 0
        %1069 = vmatpush2.bf16.xpose.msra.mxu0 0
        %1070 = vmatprep.subr.bf16.mxu0 0
        %1071 = vmatpush2.bf16.xpose.msra.mxu0 0
        %1072 = vmatprep.subr.bf16.mxu0 0
        %1073 = vmatpush2.bf16.xpose.msra.mxu0 0
        %1074 = vmatprep.mubr.bf16.mxu0 0
        %1075 = vmatmul.mubr.bf16.gmra.mxu0 %v1037
        %v1076 = vpop.f32.mrf.mxu0
        %v1077 = vadd.f32 %v915, %v1076
        %v1078 = vpop.f32.mrf.mxu0
        %v1079 = vpop.f32.mrf.mxu0
        %v1080 = vpop.f32.mrf.mxu0
        %1081 = vdwg.mxu0
        %v1082 = vsel %vm962, %v1077, -inf
        %1083 = vmax.xlane.f32.xlu0 %v1082
        %v1084 = vpop.xlane.xlu0 %1083
        %v1085 = vsub.f32 %v1077, %v1084
        %v1086 = vmul.f32 %v1085, 1.442695
        %v1087 = vpow.pop %v1086
        %v1088 = vsel %vm962, %v1087, 0.0
        %1089 = vadd.xlane.f32.xlu0 %v1088
        %v1090 = vpop.xlane.xlu0 %1089
        %v1091 = vrcp.pop %v1090
        %v1092 = vmul.f32 1.0, %v1091
        %v1093 = vmul.f32 %v1087, %v1092
        %v1094 = vpack.c.bf16 %v1093, %v1093
        %s1095 = scalar_lea.vmem %s719, 4 [#allocation10]
        %1096 = vst.msk [vmem:[%s1095] sm:$0xf] %vm976, %v1094
        %1098 = vrot.lane.b32.xlu0 %v914, 96
        %v1099 = vpop.permute.xlu0 %1098
        %v1101 = vsel %vm962, %v1094, 0
        %v1104 = vsel %vm981, %v1099, 0
        %1106 = vmatprep.subr.bf16.mxu0 0
        %1107 = vmatpush1.bf16.msra.mxu0 0
        %1108 = vmatprep.subr.bf16.mxu0 0
        %1109 = vmatpush1.bf16.msra.mxu0 0
        %1110 = vmatprep.subr.bf16.mxu0 0
        %1111 = vmatpush1.bf16.msra.mxu0 0
        %1112 = vmatprep.subr.bf16.mxu0 0
        %1113 = vmatpush1.bf16.msra.mxu0 0
        %1114 = vmatprep.subr.bf16.mxu0 0
        %1115 = vmatpush1.bf16.msra.mxu0 0
        %1116 = vmatprep.subr.bf16.mxu0 0
        %1117 = vmatpush1.bf16.msra.mxu0 0
        %1118 = vmatprep.subr.bf16.mxu0 0
        %1119 = vmatpush1.bf16.msra.mxu0 0
        %1120 = vmatprep.subr.bf16.mxu0 0
        %1121 = vmatpush1.bf16.msra.mxu0 %v1104
        %1122 = vmatprep.subr.bf16.mxu0 0
        %1123 = vmatpush2.bf16.msra.mxu0 0
        %1124 = vmatprep.subr.bf16.mxu0 0
        %1125 = vmatpush2.bf16.msra.mxu0 0
        %1126 = vmatprep.subr.bf16.mxu0 0
        %1127 = vmatpush2.bf16.msra.mxu0 0
        %1128 = vmatprep.subr.bf16.mxu0 0
        %1129 = vmatpush2.bf16.msra.mxu0 0
        %1130 = vmatprep.subr.bf16.mxu0 0
        %1131 = vmatpush2.bf16.msra.mxu0 0
        %1132 = vmatprep.subr.bf16.mxu0 0
        %1133 = vmatpush2.bf16.msra.mxu0 0
        %1134 = vmatprep.subr.bf16.mxu0 0
        %1135 = vmatpush2.bf16.msra.mxu0 0
        %1136 = vmatprep.subr.bf16.mxu0 0
        %1137 = vmatpush2.bf16.msra.mxu0 0
        %1138 = vmatprep.mubr.bf16.mxu0 0
        %1139 = vmatmul.mubr.bf16.gmra.mxu0 %v1101
        %v1140 = vpop.f32.mrf.mxu0
        %v1141 = vadd.f32 0.0, %v1140
        %v1142 = vpop.f32.mrf.mxu0
        %v1143 = vpop.f32.mrf.mxu0
        %v1144 = vpop.f32.mrf.mxu0
        %1145 = vdwg.mxu0
        %v1146 = vpack.c.bf16 %v1141, %v1141
        %s1147 = scalar_lea.vmem %s728, 16
        %v1148 = vld [vmem:[%s1147] sm:$0xf]
        %v1149 = vld [vmem:[%s1147 + $0x4] sm:$0xf]
        %v1150 = vld [vmem:[%s1147 + $0x8] sm:$0xf]
        %v1151 = vld [vmem:[%s1147 + $0xc] sm:$0xf]
        %v1156 = vunpack.c.l.b16 %v1148
        %v1157 = vunpack.c.l.b16 %v1149
        %v1158 = vunpack.c.l.b16 %v1150
        %v1159 = vunpack.c.l.b16 %v1151
        %v1160 = vpack.c.b16 %v1157, %v1156
        %v1161 = vpack.c.b16 %v1159, %v1158
        %v1165 = vsel %vm827, %v1146, 0
        %1167 = vmatprep.subr.bf16.mxu0 0
        %1168 = vmatpush1.bf16.msra.mxu0 0
        %1169 = vmatprep.subr.bf16.mxu0 0
        %1170 = vmatpush1.bf16.msra.mxu0 0
        %1171 = vmatprep.subr.bf16.mxu0 0
        %1172 = vmatpush1.bf16.msra.mxu0 0
        %1173 = vmatprep.subr.bf16.mxu0 0
        %1174 = vmatpush1.bf16.msra.mxu0 0
        %1175 = vmatprep.subr.bf16.mxu0 0
        %1176 = vmatpush1.bf16.msra.mxu0 0
        %1177 = vmatprep.subr.bf16.mxu0 0
        %1178 = vmatpush1.bf16.msra.mxu0 0
        %1179 = vmatprep.subr.bf16.mxu0 0
        %1180 = vmatpush1.bf16.msra.mxu0 %v1161
        %1181 = vmatprep.subr.bf16.mxu0 0
        %1182 = vmatpush1.bf16.msra.mxu0 %v1160
        %1183 = vmatprep.subr.bf16.mxu0 0
        %1184 = vmatpush2.bf16.msra.mxu0 0
        %1185 = vmatprep.subr.bf16.mxu0 0
        %1186 = vmatpush2.bf16.msra.mxu0 0
        %1187 = vmatprep.subr.bf16.mxu0 0
        %1188 = vmatpush2.bf16.msra.mxu0 0
        %1189 = vmatprep.subr.bf16.mxu0 0
        %1190 = vmatpush2.bf16.msra.mxu0 0
        %1191 = vmatprep.subr.bf16.mxu0 0
        %1192 = vmatpush2.bf16.msra.mxu0 0
        %1193 = vmatprep.subr.bf16.mxu0 0
        %1194 = vmatpush2.bf16.msra.mxu0 0
        %1195 = vmatprep.subr.bf16.mxu0 0
        %1196 = vmatpush2.bf16.msra.mxu0 0
        %1197 = vmatprep.subr.bf16.mxu0 0
        %1198 = vmatpush2.bf16.msra.mxu0 0
        %1199 = vmatprep.mubr.bf16.mxu0 0
        %1200 = vmatmul.mubr.bf16.gmra.mxu0 %v1165
        %v1201 = vpop.f32.mrf.mxu0
        %v1202 = vadd.f32 0.0, %v1201
        %v1203 = vpop.f32.mrf.mxu0
        %v1204 = vpop.f32.mrf.mxu0
        %v1205 = vpop.f32.mrf.mxu0
        %1206 = vdwg.mxu0
        %v1211 = vunpack.c.l.b16 %v1026
        %v1212 = vunpack.c.l.b16 %v1027
        %v1213 = vunpack.c.l.b16 %v1028
        %v1214 = vunpack.c.l.b16 %v1029
        %v1215 = vpack.c.b16 %v1212, %v1211
        %v1216 = vpack.c.b16 %v1214, %v1213
        %v1220 = vsel %vm827, %v1025, 0
        %1222 = vmatprep.subr.bf16.mxu0 0
        %1223 = vmatpush1.bf16.msra.mxu0 0
        %1224 = vmatprep.subr.bf16.mxu0 0
        %1225 = vmatpush1.bf16.msra.mxu0 0
        %1226 = vmatprep.subr.bf16.mxu0 0
        %1227 = vmatpush1.bf16.msra.mxu0 0
        %1228 = vmatprep.subr.bf16.mxu0 0
        %1229 = vmatpush1.bf16.msra.mxu0 0
        %1230 = vmatprep.subr.bf16.mxu0 0
        %1231 = vmatpush1.bf16.msra.mxu0 0
        %1232 = vmatprep.subr.bf16.mxu0 0
        %1233 = vmatpush1.bf16.msra.mxu0 0
        %1234 = vmatprep.subr.bf16.mxu0 0
        %1235 = vmatpush1.bf16.msra.mxu0 %v1216
        %1236 = vmatprep.subr.bf16.mxu0 0
        %1237 = vmatpush1.bf16.msra.mxu0 %v1215
        %1238 = vmatprep.subr.bf16.mxu0 0
        %1239 = vmatpush2.bf16.msra.mxu0 0
        %1240 = vmatprep.subr.bf16.mxu0 0
        %1241 = vmatpush2.bf16.msra.mxu0 0
        %1242 = vmatprep.subr.bf16.mxu0 0
        %1243 = vmatpush2.bf16.msra.mxu0 0
        %1244 = vmatprep.subr.bf16.mxu0 0
        %1245 = vmatpush2.bf16.msra.mxu0 0
        %1246 = vmatprep.subr.bf16.mxu0 0
        %1247 = vmatpush2.bf16.msra.mxu0 0
        %1248 = vmatprep.subr.bf16.mxu0 0
        %1249 = vmatpush2.bf16.msra.mxu0 0
        %1250 = vmatprep.subr.bf16.mxu0 0
        %1251 = vmatpush2.bf16.msra.mxu0 0
        %1252 = vmatprep.subr.bf16.mxu0 0
        %1253 = vmatpush2.bf16.msra.mxu0 0
        %1254 = vmatprep.mubr.bf16.mxu0 0
        %1255 = vmatmul.mubr.bf16.gmra.mxu0 %v1220
        %v1256 = vpop.f32.mrf.mxu0
        %v1257 = vadd.f32 %v1202, %v1256
        %v1258 = vpop.f32.mrf.mxu0
        %v1259 = vpop.f32.mrf.mxu0
        %v1260 = vpop.f32.mrf.mxu0
        %1261 = vdwg.mxu0
        %1262 = vrot.lane.b32.xlu0 %v912, 64
        %v1263 = vpop.permute.xlu0 %1262
        %1264 = vrot.lane.b32.xlu0 %v913, 64
        %v1265 = vpop.permute.xlu0 %1264
        %v1267 = vsel %vm827, %v1263, 0
        %v1270 = vsel %vm827, %v1265, 0
        %1272 = vmatprep.subr.bf16.mxu0 0
        %1273 = vmatpush1.bf16.xpose.msra.mxu0 0
        %1274 = vmatprep.subr.bf16.mxu0 0
        %1275 = vmatpush1.bf16.xpose.msra.mxu0 0
        %1276 = vmatprep.subr.bf16.mxu0 0
        %1277 = vmatpush1.bf16.xpose.msra.mxu0 0
        %1278 = vmatprep.subr.bf16.mxu0 0
        %1279 = vmatpush1.bf16.xpose.msra.mxu0 0
        %1280 = vmatprep.subr.bf16.mxu0 0
        %1281 = vmatpush1.bf16.xpose.msra.mxu0 0
        %1282 = vmatprep.subr.bf16.mxu0 0
        %1283 = vmatpush1.bf16.xpose.msra.mxu0 0
        %1284 = vmatprep.subr.bf16.mxu0 0
        %1285 = vmatpush1.bf16.xpose.msra.mxu0 0
        %1286 = vmatprep.subr.bf16.mxu0 0
        %1287 = vmatpush1.bf16.xpose.msra.mxu0 %v1270
        %1288 = vmatprep.subr.bf16.mxu0 0
        %1289 = vmatpush2.bf16.xpose.msra.mxu0 0
        %1290 = vmatprep.subr.bf16.mxu0 0
        %1291 = vmatpush2.bf16.xpose.msra.mxu0 0
        %1292 = vmatprep.subr.bf16.mxu0 0
        %1293 = vmatpush2.bf16.xpose.msra.mxu0 0
        %1294 = vmatprep.subr.bf16.mxu0 0
        %1295 = vmatpush2.bf16.xpose.msra.mxu0 0
        %1296 = vmatprep.subr.bf16.mxu0 0
        %1297 = vmatpush2.bf16.xpose.msra.mxu0 0
        %1298 = vmatprep.subr.bf16.mxu0 0
        %1299 = vmatpush2.bf16.xpose.msra.mxu0 0
        %1300 = vmatprep.subr.bf16.mxu0 0
        %1301 = vmatpush2.bf16.xpose.msra.mxu0 0
        %1302 = vmatprep.subr.bf16.mxu0 0
        %1303 = vmatpush2.bf16.xpose.msra.mxu0 0
        %1304 = vmatprep.mubr.bf16.mxu0 0
        %1305 = vmatmul.mubr.bf16.gmra.mxu0 %v1267
        %v1306 = vpop.f32.mrf.mxu0
        %v1307 = vadd.f32 %v915, %v1306
        %v1308 = vpop.f32.mrf.mxu0
        %v1309 = vpop.f32.mrf.mxu0
        %v1310 = vpop.f32.mrf.mxu0
        %1311 = vdwg.mxu0
        %v1312 = vsel %vm962, %v1307, -inf
        %1313 = vmax.xlane.f32.xlu0 %v1312
        %v1314 = vpop.xlane.xlu0 %1313
        %v1315 = vsub.f32 %v1307, %v1314
        %v1316 = vmul.f32 %v1315, 1.442695
        %v1317 = vpow.pop %v1316
        %v1318 = vsel %vm962, %v1317, 0.0
        %1319 = vadd.xlane.f32.xlu0 %v1318
        %v1320 = vpop.xlane.xlu0 %1319
        %v1321 = vrcp.pop %v1320
        %v1322 = vmul.f32 1.0, %v1321
        %v1323 = vmul.f32 %v1317, %v1322
        %v1324 = vpack.c.bf16 %v1323, %v1323
        %s1325 = scalar_lea.vmem %s719, 8 [#allocation10]
        %1326 = vst.msk [vmem:[%s1325] sm:$0xf] %vm976, %v1324
        %1327 = vrot.lane.b32.xlu0 %v914, 64
        %v1328 = vpop.permute.xlu0 %1327
        %v1330 = vsel %vm962, %v1324, 0
        %v1333 = vsel %vm981, %v1328, 0
        %1335 = vmatprep.subr.bf16.mxu0 0
        %1336 = vmatpush1.bf16.msra.mxu0 0
        %1337 = vmatprep.subr.bf16.mxu0 0
        %1338 = vmatpush1.bf16.msra.mxu0 0
        %1339 = vmatprep.subr.bf16.mxu0 0
        %1340 = vmatpush1.bf16.msra.mxu0 0
        %1341 = vmatprep.subr.bf16.mxu0 0
        %1342 = vmatpush1.bf16.msra.mxu0 0
        %1343 = vmatprep.subr.bf16.mxu0 0
        %1344 = vmatpush1.bf16.msra.mxu0 0
        %1345 = vmatprep.subr.bf16.mxu0 0
        %1346 = vmatpush1.bf16.msra.mxu0 0
        %1347 = vmatprep.subr.bf16.mxu0 0
        %1348 = vmatpush1.bf16.msra.mxu0 0
        %1349 = vmatprep.subr.bf16.mxu0 0
        %1350 = vmatpush1.bf16.msra.mxu0 %v1333
        %1351 = vmatprep.subr.bf16.mxu0 0
        %1352 = vmatpush2.bf16.msra.mxu0 0
        %1353 = vmatprep.subr.bf16.mxu0 0
        %1354 = vmatpush2.bf16.msra.mxu0 0
        %1355 = vmatprep.subr.bf16.mxu0 0
        %1356 = vmatpush2.bf16.msra.mxu0 0
        %1357 = vmatprep.subr.bf16.mxu0 0
        %1358 = vmatpush2.bf16.msra.mxu0 0
        %1359 = vmatprep.subr.bf16.mxu0 0
        %1360 = vmatpush2.bf16.msra.mxu0 0
        %1361 = vmatprep.subr.bf16.mxu0 0
        %1362 = vmatpush2.bf16.msra.mxu0 0
        %1363 = vmatprep.subr.bf16.mxu0 0
        %1364 = vmatpush2.bf16.msra.mxu0 0
        %1365 = vmatprep.subr.bf16.mxu0 0
        %1366 = vmatpush2.bf16.msra.mxu0 0
        %1367 = vmatprep.mubr.bf16.mxu0 0
        %1368 = vmatmul.mubr.bf16.gmra.mxu0 %v1330
        %v1369 = vpop.f32.mrf.mxu0
        %v1370 = vadd.f32 0.0, %v1369
        %v1371 = vpop.f32.mrf.mxu0
        %v1372 = vpop.f32.mrf.mxu0
        %v1373 = vpop.f32.mrf.mxu0
        %1374 = vdwg.mxu0
        %v1375 = vpack.c.bf16 %v1370, %v1370
        %s1376 = scalar_lea.vmem %s728, 32
        %v1377 = vld [vmem:[%s1376] sm:$0xf]
        %v1378 = vld [vmem:[%s1376 + $0x4] sm:$0xf]
        %v1379 = vld [vmem:[%s1376 + $0x8] sm:$0xf]
        %v1380 = vld [vmem:[%s1376 + $0xc] sm:$0xf]
        %v1385 = vunpack.c.l.b16 %v1377
        %v1386 = vunpack.c.l.b16 %v1378
        %v1387 = vunpack.c.l.b16 %v1379
        %v1388 = vunpack.c.l.b16 %v1380
        %v1389 = vpack.c.b16 %v1386, %v1385
        %v1390 = vpack.c.b16 %v1388, %v1387
        %v1394 = vsel %vm827, %v1375, 0
        %1396 = vmatprep.subr.bf16.mxu0 0
        %1397 = vmatpush1.bf16.msra.mxu0 0
        %1398 = vmatprep.subr.bf16.mxu0 0
        %1399 = vmatpush1.bf16.msra.mxu0 0
        %1400 = vmatprep.subr.bf16.mxu0 0
        %1401 = vmatpush1.bf16.msra.mxu0 0
        %1402 = vmatprep.subr.bf16.mxu0 0
        %1403 = vmatpush1.bf16.msra.mxu0 0
        %1404 = vmatprep.subr.bf16.mxu0 0
        %1405 = vmatpush1.bf16.msra.mxu0 0
        %1406 = vmatprep.subr.bf16.mxu0 0
        %1407 = vmatpush1.bf16.msra.mxu0 0
        %1408 = vmatprep.subr.bf16.mxu0 0
        %1409 = vmatpush1.bf16.msra.mxu0 %v1390
        %1410 = vmatprep.subr.bf16.mxu0 0
        %1411 = vmatpush1.bf16.msra.mxu0 %v1389
        %1412 = vmatprep.subr.bf16.mxu0 0
        %1413 = vmatpush2.bf16.msra.mxu0 0
        %1414 = vmatprep.subr.bf16.mxu0 0
        %1415 = vmatpush2.bf16.msra.mxu0 0
        %1416 = vmatprep.subr.bf16.mxu0 0
        %1417 = vmatpush2.bf16.msra.mxu0 0
        %1418 = vmatprep.subr.bf16.mxu0 0
        %1419 = vmatpush2.bf16.msra.mxu0 0
        %1420 = vmatprep.subr.bf16.mxu0 0
        %1421 = vmatpush2.bf16.msra.mxu0 0
        %1422 = vmatprep.subr.bf16.mxu0 0
        %1423 = vmatpush2.bf16.msra.mxu0 0
        %1424 = vmatprep.subr.bf16.mxu0 0
        %1425 = vmatpush2.bf16.msra.mxu0 0
        %1426 = vmatprep.subr.bf16.mxu0 0
        %1427 = vmatpush2.bf16.msra.mxu0 0
        %1428 = vmatprep.mubr.bf16.mxu0 0
        %1429 = vmatmul.mubr.bf16.gmra.mxu0 %v1394
        %v1430 = vpop.f32.mrf.mxu0
        %v1431 = vadd.f32 0.0, %v1430
        %v1432 = vpop.f32.mrf.mxu0
        %v1433 = vpop.f32.mrf.mxu0
        %v1434 = vpop.f32.mrf.mxu0
        %1435 = vdwg.mxu0
        %v1436 = vadd.f32 %v1257, %v1431
        %1437 = vrot.lane.b32.xlu0 %v912, 32
        %v1438 = vpop.permute.xlu0 %1437
        %1439 = vrot.lane.b32.xlu0 %v913, 32
        %v1440 = vpop.permute.xlu0 %1439
        %v1442 = vsel %vm827, %v1438, 0
        %v1445 = vsel %vm827, %v1440, 0
        %1447 = vmatprep.subr.bf16.mxu0 0
        %1448 = vmatpush1.bf16.xpose.msra.mxu0 0
        %1449 = vmatprep.subr.bf16.mxu0 0
        %1450 = vmatpush1.bf16.xpose.msra.mxu0 0
        %1451 = vmatprep.subr.bf16.mxu0 0
        %1452 = vmatpush1.bf16.xpose.msra.mxu0 0
        %1453 = vmatprep.subr.bf16.mxu0 0
        %1454 = vmatpush1.bf16.xpose.msra.mxu0 0
        %1455 = vmatprep.subr.bf16.mxu0 0
        %1456 = vmatpush1.bf16.xpose.msra.mxu0 0
        %1457 = vmatprep.subr.bf16.mxu0 0
        %1458 = vmatpush1.bf16.xpose.msra.mxu0 0
        %1459 = vmatprep.subr.bf16.mxu0 0
        %1460 = vmatpush1.bf16.xpose.msra.mxu0 0
        %1461 = vmatprep.subr.bf16.mxu0 0
        %1462 = vmatpush1.bf16.xpose.msra.mxu0 %v1445
        %1463 = vmatprep.subr.bf16.mxu0 0
        %1464 = vmatpush2.bf16.xpose.msra.mxu0 0
        %1465 = vmatprep.subr.bf16.mxu0 0
        %1466 = vmatpush2.bf16.xpose.msra.mxu0 0
        %1467 = vmatprep.subr.bf16.mxu0 0
        %1468 = vmatpush2.bf16.xpose.msra.mxu0 0
        %1469 = vmatprep.subr.bf16.mxu0 0
        %1470 = vmatpush2.bf16.xpose.msra.mxu0 0
        %1471 = vmatprep.subr.bf16.mxu0 0
        %1472 = vmatpush2.bf16.xpose.msra.mxu0 0
        %1473 = vmatprep.subr.bf16.mxu0 0
        %1474 = vmatpush2.bf16.xpose.msra.mxu0 0
        %1475 = vmatprep.subr.bf16.mxu0 0
        %1476 = vmatpush2.bf16.xpose.msra.mxu0 0
        %1477 = vmatprep.subr.bf16.mxu0 0
        %1478 = vmatpush2.bf16.xpose.msra.mxu0 0
        %1479 = vmatprep.mubr.bf16.mxu0 0
        %1480 = vmatmul.mubr.bf16.gmra.mxu0 %v1442
        %v1481 = vpop.f32.mrf.mxu0
        %v1482 = vadd.f32 %v915, %v1481
        %v1483 = vpop.f32.mrf.mxu0
        %v1484 = vpop.f32.mrf.mxu0
        %v1485 = vpop.f32.mrf.mxu0
        %1486 = vdwg.mxu0
        %v1487 = vsel %vm962, %v1482, -inf
        %1488 = vmax.xlane.f32.xlu0 %v1487
        %v1489 = vpop.xlane.xlu0 %1488
        %v1490 = vsub.f32 %v1482, %v1489
        %v1491 = vmul.f32 %v1490, 1.442695
        %v1492 = vpow.pop %v1491
        %v1493 = vsel %vm962, %v1492, 0.0
        %1494 = vadd.xlane.f32.xlu0 %v1493
        %v1495 = vpop.xlane.xlu0 %1494
        %v1496 = vrcp.pop %v1495
        %v1497 = vmul.f32 1.0, %v1496
        %v1498 = vmul.f32 %v1492, %v1497
        %v1499 = vpack.c.bf16 %v1498, %v1498
        %s1500 = scalar_lea.vmem %s719, 12 [#allocation10]
        %1501 = vst.msk [vmem:[%s1500] sm:$0xf] %vm976, %v1499
        %1502 = vrot.lane.b32.xlu0 %v914, 32
        %v1503 = vpop.permute.xlu0 %1502
        %v1505 = vsel %vm962, %v1499, 0
        %v1508 = vsel %vm981, %v1503, 0
        %1510 = vmatprep.subr.bf16.mxu0 0
        %1511 = vmatpush1.bf16.msra.mxu0 0
        %1512 = vmatprep.subr.bf16.mxu0 0
        %1513 = vmatpush1.bf16.msra.mxu0 0
        %1514 = vmatprep.subr.bf16.mxu0 0
        %1515 = vmatpush1.bf16.msra.mxu0 0
        %1516 = vmatprep.subr.bf16.mxu0 0
        %1517 = vmatpush1.bf16.msra.mxu0 0
        %1518 = vmatprep.subr.bf16.mxu0 0
        %1519 = vmatpush1.bf16.msra.mxu0 0
        %1520 = vmatprep.subr.bf16.mxu0 0
        %1521 = vmatpush1.bf16.msra.mxu0 0
        %1522 = vmatprep.subr.bf16.mxu0 0
        %1523 = vmatpush1.bf16.msra.mxu0 0
        %1524 = vmatprep.subr.bf16.mxu0 0
        %1525 = vmatpush1.bf16.msra.mxu0 %v1508
        %1526 = vmatprep.subr.bf16.mxu0 0
        %1527 = vmatpush2.bf16.msra.mxu0 0
        %1528 = vmatprep.subr.bf16.mxu0 0
        %1529 = vmatpush2.bf16.msra.mxu0 0
        %1530 = vmatprep.subr.bf16.mxu0 0
        %1531 = vmatpush2.bf16.msra.mxu0 0
        %1532 = vmatprep.subr.bf16.mxu0 0
        %1533 = vmatpush2.bf16.msra.mxu0 0
        %1534 = vmatprep.subr.bf16.mxu0 0
        %1535 = vmatpush2.bf16.msra.mxu0 0
        %1536 = vmatprep.subr.bf16.mxu0 0
        %1537 = vmatpush2.bf16.msra.mxu0 0
        %1538 = vmatprep.subr.bf16.mxu0 0
        %1539 = vmatpush2.bf16.msra.mxu0 0
        %1540 = vmatprep.subr.bf16.mxu0 0
        %1541 = vmatpush2.bf16.msra.mxu0 0
        %1542 = vmatprep.mubr.bf16.mxu0 0
        %1543 = vmatmul.mubr.bf16.gmra.mxu0 %v1505
        %v1544 = vpop.f32.mrf.mxu0
        %v1545 = vadd.f32 0.0, %v1544
        %v1546 = vpop.f32.mrf.mxu0
        %v1547 = vpop.f32.mrf.mxu0
        %v1548 = vpop.f32.mrf.mxu0
        %1549 = vdwg.mxu0
        %v1550 = vpack.c.bf16 %v1545, %v1545
        %s1551 = scalar_lea.vmem %s728, 48
        %v1552 = vld [vmem:[%s1551] sm:$0xf]
        %v1553 = vld [vmem:[%s1551 + $0x4] sm:$0xf]
        %v1554 = vld [vmem:[%s1551 + $0x8] sm:$0xf]
        %v1555 = vld [vmem:[%s1551 + $0xc] sm:$0xf]
        %v1560 = vunpack.c.l.b16 %v1552
        %v1561 = vunpack.c.l.b16 %v1553
        %v1562 = vunpack.c.l.b16 %v1554
        %v1563 = vunpack.c.l.b16 %v1555
        %v1564 = vpack.c.b16 %v1561, %v1560
        %v1565 = vpack.c.b16 %v1563, %v1562
        %v1569 = vsel %vm827, %v1550, 0
        %1571 = vmatprep.subr.bf16.mxu0 0
        %1572 = vmatpush1.bf16.msra.mxu0 0
        %1573 = vmatprep.subr.bf16.mxu0 0
        %1574 = vmatpush1.bf16.msra.mxu0 0
        %1575 = vmatprep.subr.bf16.mxu0 0
        %1576 = vmatpush1.bf16.msra.mxu0 0
        %1577 = vmatprep.subr.bf16.mxu0 0
        %1578 = vmatpush1.bf16.msra.mxu0 0
        %1579 = vmatprep.subr.bf16.mxu0 0
        %1580 = vmatpush1.bf16.msra.mxu0 0
        %1581 = vmatprep.subr.bf16.mxu0 0
        %1582 = vmatpush1.bf16.msra.mxu0 0
        %1583 = vmatprep.subr.bf16.mxu0 0
        %1584 = vmatpush1.bf16.msra.mxu0 %v1565
        %1585 = vmatprep.subr.bf16.mxu0 0
        %1586 = vmatpush1.bf16.msra.mxu0 %v1564
        %1587 = vmatprep.subr.bf16.mxu0 0
        %1588 = vmatpush2.bf16.msra.mxu0 0
        %1589 = vmatprep.subr.bf16.mxu0 0
        %1590 = vmatpush2.bf16.msra.mxu0 0
        %1591 = vmatprep.subr.bf16.mxu0 0
        %1592 = vmatpush2.bf16.msra.mxu0 0
        %1593 = vmatprep.subr.bf16.mxu0 0
        %1594 = vmatpush2.bf16.msra.mxu0 0
        %1595 = vmatprep.subr.bf16.mxu0 0
        %1596 = vmatpush2.bf16.msra.mxu0 0
        %1597 = vmatprep.subr.bf16.mxu0 0
        %1598 = vmatpush2.bf16.msra.mxu0 0
        %1599 = vmatprep.subr.bf16.mxu0 0
        %1600 = vmatpush2.bf16.msra.mxu0 0
        %1601 = vmatprep.subr.bf16.mxu0 0
        %1602 = vmatpush2.bf16.msra.mxu0 0
        %1603 = vmatprep.mubr.bf16.mxu0 0
        %1604 = vmatmul.mubr.bf16.gmra.mxu0 %v1569
        %v1605 = vpop.f32.mrf.mxu0
        %v1606 = vadd.f32 0.0, %v1605
        %v1607 = vpop.f32.mrf.mxu0
        %v1608 = vpop.f32.mrf.mxu0
        %v1609 = vpop.f32.mrf.mxu0
        %1610 = vdwg.mxu0
        %v1611 = vadd.f32 %v1436, %v1606
        %v1612 = vld [vmem:[%s731] sm:$0x1]
        %v1614 = vlaneseq
        %v1615 = vshrl.u32 %v1614, 7
        %v1616 = vsub.s32 0, %v1615
        %v1617 = vrot.slane %v1612, %v1616
        %v1619 = vadd.f32 %v1611, %v1617
        %v1620 = vadd.f32 %v768, %v1619
        %v1621 = vld [vmem:[%s750] sm:$0x1]
        %v1622 = vld [vmem:[%s753] sm:$0x1]
        %v1623 = vsel %vm827, %v1620, 0.0
        %1624 = vadd.xlane.f32.xlu0 %v1623
        %v1625 = vpop.xlane.xlu0 %1624
        %v1626 = vrcp.pop 32.0
        %v1627 = vmul.f32 %v1625, %v1626
        %v1628 = vsub.f32 %v1620, %v1627
        %v1629 = vmul.f32 %v1628, %v1628
        %v1630 = vsel %vm827, %v1629, 0.0
        %1631 = vadd.xlane.f32.xlu0 %v1630
        %v1632 = vpop.xlane.xlu0 %1631
        %v1633 = vmul.f32 %v1632, %v1626
        %v1634 = vadd.f32 %v1633, 1e-09
        %v1635 = vrsqrt.pop %v1634
        %v1636 = vmul.f32 %v1628, %v1635
        %v1638 = vlaneseq
        %v1639 = vshrl.u32 %v1638, 7
        %v1640 = vsub.s32 0, %v1639
        %v1641 = vrot.slane %v1621, %v1640
        %v1643 = vmul.f32 %v1636, %v1641
        %v1645 = vlaneseq
        %v1646 = vshrl.u32 %v1645, 7
        %v1647 = vsub.s32 0, %v1646
        %v1648 = vrot.slane %v1622, %v1647
        %v1650 = vadd.f32 %v1643, %v1648
        %v1651 = vpack.c.bf16 %v1650, %v1650
        %v1652 = vld [vmem:[%s736] sm:$0xf]
        %v1653 = vld [vmem:[%s736 + $0x4] sm:$0xf]
        %v1654 = vld [vmem:[%s736 + $0x8] sm:$0xf]
        %v1655 = vld [vmem:[%s736 + $0xc] sm:$0xf]
        %v1656 = vld [vmem:[%s739] sm:$0x1]
        %v1658 = vlaneseq
        %v1659 = vshrl.u32 %v1658, 7
        %v1660 = vsub.s32 0, %v1659
        %v1661 = vrot.slane %v1656, %v1660
        %v1667 = vunpack.c.l.b16 %v1652
        %v1668 = vunpack.c.l.b16 %v1653
        %v1669 = vunpack.c.l.b16 %v1654
        %v1670 = vunpack.c.l.b16 %v1655
        %v1671 = vpack.c.b16 %v1668, %v1667
        %v1672 = vpack.c.b16 %v1670, %v1669
        %v1676 = vsel %vm827, %v1651, 0
        %1678 = vmatprep.subr.bf16.mxu0 0
        %1679 = vmatpush1.bf16.msra.mxu0 0
        %1680 = vmatprep.subr.bf16.mxu0 0
        %1681 = vmatpush1.bf16.msra.mxu0 0
        %1682 = vmatprep.subr.bf16.mxu0 0
        %1683 = vmatpush1.bf16.msra.mxu0 0
        %1684 = vmatprep.subr.bf16.mxu0 0
        %1685 = vmatpush1.bf16.msra.mxu0 0
        %1686 = vmatprep.subr.bf16.mxu0 0
        %1687 = vmatpush1.bf16.msra.mxu0 0
        %1688 = vmatprep.subr.bf16.mxu0 0
        %1689 = vmatpush1.bf16.msra.mxu0 0
        %1690 = vmatprep.subr.bf16.mxu0 0
        %1691 = vmatpush1.bf16.msra.mxu0 %v1672
        %1692 = vmatprep.subr.bf16.mxu0 0
        %1693 = vmatpush1.bf16.msra.mxu0 %v1671
        %1694 = vmatprep.subr.bf16.mxu0 0
        %1695 = vmatpush2.bf16.msra.mxu0 0
        %1696 = vmatprep.subr.bf16.mxu0 0
        %1697 = vmatpush2.bf16.msra.mxu0 0
        %1698 = vmatprep.subr.bf16.mxu0 0
        %1699 = vmatpush2.bf16.msra.mxu0 0
        %1700 = vmatprep.subr.bf16.mxu0 0
        %1701 = vmatpush2.bf16.msra.mxu0 0
        %1702 = vmatprep.subr.bf16.mxu0 0
        %1703 = vmatpush2.bf16.msra.mxu0 0
        %1704 = vmatprep.subr.bf16.mxu0 0
        %1705 = vmatpush2.bf16.msra.mxu0 0
        %1706 = vmatprep.subr.bf16.mxu0 0
        %1707 = vmatpush2.bf16.msra.mxu0 0
        %1708 = vmatprep.subr.bf16.mxu0 0
        %1709 = vmatpush2.bf16.msra.mxu0 0
        %1710 = vmatprep.mubr.bf16.mxu0 0
        %1711 = vmatmul.mubr.bf16.gmra.mxu0 %v1676
        %v1712 = vpop.f32.mrf.mxu0
        %v1713 = vadd.f32 %v1661, %v1712
        %v1714 = vpop.f32.mrf.mxu0
        %v1715 = vpop.f32.mrf.mxu0
        %v1716 = vpop.f32.mrf.mxu0
        %1717 = vdwg.mxu0
        %v1718 = vmul.f32 %v1713, 0.5
        %v1719 = vmul.f32 %v1713, 0.044715
        %v1720 = vmul.f32 %v1719, %v1713
        %v1721 = vmul.f32 %v1720, %v1713
        %v1722 = vadd.f32 %v1713, %v1721
        %v1723 = vmul.f32 %v1722, 0.7978846
        %v1724 = vtanh.pop %v1723
        %v1725 = vadd.f32 %v1724, 1.0
        %v1726 = vmul.f32 %v1718, %v1725
        %v1727 = vpack.c.bf16 %v1726, %v1726
        %v1728 = vld [vmem:[%s744] sm:$0xf]
        %v1729 = vld [vmem:[%s744 + $0x4] sm:$0xf]
        %v1730 = vld [vmem:[%s744 + $0x8] sm:$0xf]
        %v1731 = vld [vmem:[%s744 + $0xc] sm:$0xf]
        %v1732 = vld [vmem:[%s744 + $0x10] sm:$0xf]
        %v1733 = vld [vmem:[%s744 + $0x14] sm:$0xf]
        %v1734 = vld [vmem:[%s744 + $0x18] sm:$0xf]
        %v1735 = vld [vmem:[%s744 + $0x1c] sm:$0xf]
        %v1736 = vld [vmem:[%s744 + $0x20] sm:$0xf]
        %v1737 = vld [vmem:[%s744 + $0x24] sm:$0xf]
        %v1738 = vld [vmem:[%s744 + $0x28] sm:$0xf]
        %v1739 = vld [vmem:[%s744 + $0x2c] sm:$0xf]
        %v1740 = vld [vmem:[%s744 + $0x30] sm:$0xf]
        %v1741 = vld [vmem:[%s744 + $0x34] sm:$0xf]
        %v1742 = vld [vmem:[%s744 + $0x38] sm:$0xf]
        %v1743 = vld [vmem:[%s744 + $0x3c] sm:$0xf]
        %v1744 = vld [vmem:[%s747] sm:$0x1]
        %v1746 = vlaneseq
        %v1747 = vshrl.u32 %v1746, 7
        %v1748 = vsub.s32 0, %v1747
        %v1749 = vrot.slane %v1744, %v1748
        %v1767 = vunpack.c.l.b16 %v1728
        %v1768 = vunpack.c.l.b16 %v1729
        %v1769 = vunpack.c.l.b16 %v1730
        %v1770 = vunpack.c.l.b16 %v1731
        %v1771 = vunpack.c.l.b16 %v1732
        %v1772 = vunpack.c.l.b16 %v1733
        %v1773 = vunpack.c.l.b16 %v1734
        %v1774 = vunpack.c.l.b16 %v1735
        %v1775 = vunpack.c.l.b16 %v1736
        %v1776 = vunpack.c.l.b16 %v1737
        %v1777 = vunpack.c.l.b16 %v1738
        %v1778 = vunpack.c.l.b16 %v1739
        %v1779 = vunpack.c.l.b16 %v1740
        %v1780 = vunpack.c.l.b16 %v1741
        %v1781 = vunpack.c.l.b16 %v1742
        %v1782 = vunpack.c.l.b16 %v1743
        %v1783 = vpack.c.b16 %v1768, %v1767
        %v1784 = vpack.c.b16 %v1770, %v1769
        %v1785 = vpack.c.b16 %v1772, %v1771
        %v1786 = vpack.c.b16 %v1774, %v1773
        %v1787 = vpack.c.b16 %v1776, %v1775
        %v1788 = vpack.c.b16 %v1778, %v1777
        %v1789 = vpack.c.b16 %v1780, %v1779
        %v1790 = vpack.c.b16 %v1782, %v1781
        %1799 = vmatprep.subr.bf16.mxu0 0
        %1800 = vmatpush1.bf16.msra.mxu0 %v1790
        %1801 = vmatprep.subr.bf16.mxu0 0
        %1802 = vmatpush1.bf16.msra.mxu0 %v1789
        %1803 = vmatprep.subr.bf16.mxu0 0
        %1804 = vmatpush1.bf16.msra.mxu0 %v1788
        %1805 = vmatprep.subr.bf16.mxu0 0
        %1806 = vmatpush1.bf16.msra.mxu0 %v1787
        %1807 = vmatprep.subr.bf16.mxu0 0
        %1808 = vmatpush1.bf16.msra.mxu0 %v1786
        %1809 = vmatprep.subr.bf16.mxu0 0
        %1810 = vmatpush1.bf16.msra.mxu0 %v1785
        %1811 = vmatprep.subr.bf16.mxu0 0
        %1812 = vmatpush1.bf16.msra.mxu0 %v1784
        %1813 = vmatprep.subr.bf16.mxu0 0
        %1814 = vmatpush1.bf16.msra.mxu0 %v1783
        %1815 = vmatprep.subr.bf16.mxu0 0
        %1816 = vmatpush2.bf16.msra.mxu0 0
        %1817 = vmatprep.subr.bf16.mxu0 0
        %1818 = vmatpush2.bf16.msra.mxu0 0
        %1819 = vmatprep.subr.bf16.mxu0 0
        %1820 = vmatpush2.bf16.msra.mxu0 0
        %1821 = vmatprep.subr.bf16.mxu0 0
        %1822 = vmatpush2.bf16.msra.mxu0 0
        %1823 = vmatprep.subr.bf16.mxu0 0
        %1824 = vmatpush2.bf16.msra.mxu0 0
        %1825 = vmatprep.subr.bf16.mxu0 0
        %1826 = vmatpush2.bf16.msra.mxu0 0
        %1827 = vmatprep.subr.bf16.mxu0 0
        %1828 = vmatpush2.bf16.msra.mxu0 0
        %1829 = vmatprep.subr.bf16.mxu0 0
        %1830 = vmatpush2.bf16.msra.mxu0 0
        %1831 = vmatprep.mubr.bf16.mxu0 0
        %1832 = vmatmul.mubr.bf16.gmra.mxu0 %v1727
        %v1833 = vpop.f32.mrf.mxu0
        %v1834 = vadd.f32 %v1749, %v1833
        %v1835 = vpop.f32.mrf.mxu0
        %v1836 = vpop.f32.mrf.mxu0
        %v1837 = vpop.f32.mrf.mxu0
        %1838 = vdwg.mxu0
        %v1839 = vadd.f32 %v1650, %v1834
        %v1840 = vld [vmem:[%s756] sm:$0x1]
        %v1841 = vld [vmem:[%s759] sm:$0x1]
        %v1842 = vsel %vm827, %v1839, 0.0
        %1843 = vadd.xlane.f32.xlu0 %v1842
        %v1844 = vpop.xlane.xlu0 %1843
        %v1845 = vmul.f32 %v1844, %v1626
        %v1846 = vsub.f32 %v1839, %v1845
        %v1847 = vmul.f32 %v1846, %v1846
        %v1848 = vsel %vm827, %v1847, 0.0
        %1849 = vadd.xlane.f32.xlu0 %v1848
        %v1850 = vpop.xlane.xlu0 %1849
        %v1851 = vmul.f32 %v1850, %v1626
        %v1852 = vadd.f32 %v1851, 1e-09
        %v1853 = vrsqrt.pop %v1852
        %v1854 = vmul.f32 %v1846, %v1853
        %v1856 = vlaneseq
        %v1857 = vshrl.u32 %v1856, 7
        %v1858 = vsub.s32 0, %v1857
        %v1859 = vrot.slane %v1840, %v1858
        %v1861 = vmul.f32 %v1854, %v1859
        %v1863 = vlaneseq
        %v1864 = vshrl.u32 %v1863, 7
        %v1865 = vsub.s32 0, %v1864
        %v1866 = vrot.slane %v1841, %v1865
        %v1868 = vadd.f32 %v1861, %v1866
        %p1869 = scmp.lt.s32.totalorder %s42, 1
        // Predicated region
        $region93: #{tpu_custom_call.1} parent=75 // pred_check
          %p1870 = pneg %p1869
        $region94: #{tpu_custom_call.1} parent=75 // pred_check_branch
          %1872 = sbr.rel (%p1870) target = $region96
        $region95: #{tpu_custom_call.1} parent=75 // pred_region
          %1873 = vst.msk [vmem:[#allocation2] sm:$0xff] %vm827, %v1868
        $region96: #{tpu_custom_call.1} parent=75 // pred_fallthru
          _
        %p1874 = scmp.eq.s32.totalorder %s42, 1
        // Predicated region
        $region97: #{tpu_custom_call.1} parent=75 // pred_check
          %p1875 = pneg %p1874
        $region98: #{tpu_custom_call.1} parent=75 // pred_check_branch
          %1877 = sbr.rel (%p1875) target = $region100
        $region99: #{tpu_custom_call.1} parent=75 // pred_region
          %1878 = vst.msk [vmem:[%s712] sm:$0xff] %vm827, %v1868
        $region100: #{tpu_custom_call.1} parent=75 // pred_fallthru
          _
        %s1879 = sand.u32 %s416, 1
        %s1880 = scalar_lea.sflag [#allocation5], %s1879
        %s1881 = sand.u32 %s416, 1
        %s1882 = smul.addr %s1881, 8
        %s1883 = scalar_lea.vmem [#allocation9], %s1882
        %s1884 = sand.u32 %s444, 1
        %s1885 = scalar_lea.sflag [#allocation11], %s1884
        %s1886 = sand.u32 %s444, 1
        %s1887 = smul.addr %s1886, 16
        %s1888 = scalar_lea.vmem [#allocation10], %s1887
        // Predicated region
        $region101: #{tpu_custom_call.1} parent=75 // pred_check
          %p1889 = pneg %p426
        $region102: #{tpu_custom_call.1} parent=75 // pred_check_branch
          %1891 = sbr.rel (%p1889) target = $region104
        $region103: #{tpu_custom_call.1} parent=75 // pred_region
          %s1893 = ssub.s32 128, 128
          %1894 = vsyncadd %s1880, %s1893
          %s1895 = smul.addr %s41, 128
          %s1896 = scalar_lea.hbm %s14, %s1895
          %s1898 = sshll.u32 %s1883, 4
          %s1899 = int_to_ptr.vmem [resolvable:$true] %s1898
          %1901 = dma.vmem_to_hbm [thread:$0]  %s1899, 128, %s1896, %s1880
        $region104: #{tpu_custom_call.1} parent=75 // pred_fallthru
          _
        // Predicated region
        $region105: #{tpu_custom_call.1} parent=75 // pred_check
          %p1902 = pneg %p454
        $region106: #{tpu_custom_call.1} parent=75 // pred_check_branch
          %1904 = sbr.rel (%p1902) target = $region108
        $region107: #{tpu_custom_call.1} parent=75 // pred_region
          %s1906 = ssub.s32 256, 256
          %1907 = vsyncadd %s1885, %s1906
          %s1908 = smul.addr %s42, 8
          %s1909 = sadd.s32 %s41, %s1908
          %s1910 = smul.addr %s1909, 64
          %s1911 = scalar_lea.hbm %s15, %s1910
          %s1912 = sshll.u32 %s1888, 4
          %s1913 = int_to_ptr.vmem [resolvable:$true] %s1912
          %1918 = dma.vmem_to_hbm [thread:$0]  %s1913, 256, %s1911, %s1885, 64, 128, 4
        $region108: #{tpu_custom_call.1} parent=75 // pred_fallthru
          _
      $region76: #{tpu_custom_call.1} parent=5 // pred_fallthru
        _
      %p1919 = scmp.le.s32.totalorder 2, %s32
      // Predicated region
      $region109: #{tpu_custom_call.1} parent=5 // pred_check
        %p1920 = pneg %p1919
      $region110: #{tpu_custom_call.1} parent=5 // pred_check_branch
        %1922 = sbr.rel (%p1920) target = $region112
      $region111: #{tpu_custom_call.1} parent=5 // pred_region
        %s1923 = ssub.s32 %s32, 2
        // Predicated region
        $region113: #{tpu_custom_call.1} parent=111 // pred_check
          %p1924 = pneg %p432
        $region114: #{tpu_custom_call.1} parent=111 // pred_check_branch
          %1926 = sbr.rel (%p1924) target = $region116
        $region115: #{tpu_custom_call.1} parent=111 // pred_region
          %s1927 = sand.u32 %s417, 1
          %s1928 = scalar_lea.sflag [#allocation5], %s1927
          %s1929 = sand.u32 %s417, 1
          %s1930 = smul.addr %s1929, 8
          %s1931 = scalar_lea.vmem [#allocation9], %s1930
          %1932 = dma.done %s1928, 128
        $region116: #{tpu_custom_call.1} parent=111 // pred_fallthru
          _
        // Predicated region
        $region117: #{tpu_custom_call.1} parent=111 // pred_check
          %p1933 = pneg %p460
        $region118: #{tpu_custom_call.1} parent=111 // pred_check_branch
          %1935 = sbr.rel (%p1933) target = $region120
        $region119: #{tpu_custom_call.1} parent=111 // pred_region
          %s1936 = sand.u32 %s445, 1
          %s1937 = scalar_lea.sflag [#allocation11], %s1936
          %s1938 = sand.u32 %s445, 1
          %s1939 = smul.addr %s1938, 16
          %s1940 = scalar_lea.vmem [#allocation10], %s1939
          %1941 = dma.done %s1937, 256
        $region120: #{tpu_custom_call.1} parent=111 // pred_fallthru
          _
      $region112: #{tpu_custom_call.1} parent=5 // pred_fallthru
        _
    $region6: #{tpu_custom_call.1} parent=1 // loop_footer
      %s36 = sadd.s32 1, %s32
    $region7: #{tpu_custom_call.1} parent=1 // loop_footer_branch
      %31 = sbr.rel target = $region3
    $region8: #{tpu_custom_call.1} parent=1 // loop_exit
      _
    %1942 = vsyncpa [#allocation4], 1
    %s1943 = scalar_lea.sflag [#allocation4], 1
    %1944 = vsyncpa %s1943, 1
    %1945 = vsyncpa [#allocation7], 1
    %1946 = vsyncpa [#allocation5], 1
    %s1947 = scalar_lea.sflag [#allocation5], 1
    %1948 = vsyncpa %s1947, 1
    %1949 = vsyncpa [#allocation11], 1
    %s1950 = scalar_lea.sflag [#allocation11], 1
    %1951 = vsyncpa %s1950, 1

</llo_original>
